<compile_context>
chip_gen: v6e
topology: v6e:2x2x1
jax: 0.10.0
libtpu: 0.0.40
codegen_flags: <defaults>
</compile_context>

<pallas_src>
import functools

import jax
import jax.numpy as jnp
from jax.experimental import pallas as pl
from jax.experimental.pallas import tpu as pltpu


def _round_up(x, m):
    return ((x + m - 1) // m) * m


def _pad2(a, rows, cols):
    a = jnp.asarray(a, jnp.float32)
    return jnp.pad(a, ((0, rows - a.shape[0]), (0, cols - a.shape[1])))


# ----------------------------------------------------------------------------
# Pallas kernel: multi-layer tanh RNN + fused embedding + output projection
# ----------------------------------------------------------------------------
def _char_rnn_kernel(num_layers, seq_len, batch_pad, hidden_pad, cls_pad,
                     mm_dtype, ids_ref, *rest):
    """Argument layout (after the statically-bound config):
        ids_ref : (seq*batch_pad, 1) int32  time-major token ids (padded rows = 0)
        rest[:3*L+2] weight refs (all padded to 128 lanes):
          [0] W0    (cls_pad, hidden_pad) = embedding @ Wih_0^T   (mm_dtype)
          [1] Whh_0 (hidden_pad, hidden_pad)                       (mm_dtype)
          [2] b_0   (1, hidden_pad) = bih_0 + bhh_0                (f32)
          for l in 1..L-1: [3l] Wih_l, [3l+1] Whh_l, [3l+2] b_l
          [-2] Wproj (hidden_pad, cls_pad) (mm_dtype), [-1] bproj (1, cls_pad)
        then: out_ref (seq*batch_pad, cls_pad) f32 (time-major),
              hn_ref  (L, batch_pad, hidden_pad) f32.
    """
    n_w = 3 * num_layers + 2
    w_refs = rest[:n_w]
    out_ref, hn_ref = rest[n_w], rest[n_w + 1]
    nrows = seq_len * batch_pad

    # ---- layer 0: fused embedding gather + input projection (one matmul) ----
    ids = ids_ref[...]                                              # (nrows, 1)
    cls = jax.lax.broadcasted_iota(jnp.int32, (nrows, cls_pad), 1)
    onehot = (ids == cls).astype(mm_dtype)                          # lane-dense
    slab = (jnp.dot(onehot, w_refs[0][...],
                    preferred_element_type=jnp.float32)
            + w_refs[2][...])                                       # (nrows, Hp) f32

    # ---- stacked tanh-RNN layers (slab stays in vregs, time-major rows) ----
    for l in range(num_layers):
        if l > 0:
            # Hoisted input contribution for this layer: one big matmul over
            # the whole previous-layer slab; off the recurrence critical path.
            slab = (jnp.dot(slab.astype(mm_dtype), w_refs[3 * l][...],
                            preferred_element_type=jnp.float32)
                    + w_refs[3 * l + 2][...])

        whh = w_refs[3 * l + 1][...]                  # resident across the loop
        h = jnp.zeros((batch_pad, hidden_pad), jnp.float32)   # hs=None -> zeros
        hs = []
        for t in range(seq_len):                      # small seq: static unroll
            ih_t = slab[t * batch_pad:(t + 1) * batch_pad, :]   # full (8,128)
            pre = ih_t + jnp.dot(h.astype(mm_dtype), whh,
                                 preferred_element_type=jnp.float32)
            h = jnp.tanh(pre)                         # f32 tanh on the EUP
            hs.append(h)                              # stays in vregs
        hn_ref[l] = h                                 # one dense (8,128) store
        slab = jnp.concatenate(hs, axis=0)            # next layer input / output

    # ---- batched output projection: one matmul, one dense contiguous store --
    out_ref[...] = (
        jnp.dot(slab.astype(mm_dtype), w_refs[-2][...],
                preferred_element_type=jnp.float32)
        + w_refs[-1][...]
    )


# ----------------------------------------------------------------------------
# One-time weight packing (transpose + pad to 128 lanes + fuse + cast)
# ----------------------------------------------------------------------------
def pack_params(params, *, num_layers, hidden_size, num_classes,
                mm_dtype=jnp.bfloat16):
    hp = jax.lax.Precision.HIGHEST
    h_pad = _round_up(hidden_size, 128)
    c_pad = _round_up(num_classes, 128)

    # Fuse the embedding table with the layer-0 input weight:
    #   onehot @ (E @ Wih0^T) == embed(x) @ Wih0^T  (exact row selection).
    w0 = jnp.dot(params["embedding"], params["w_ih_0"].T, precision=hp)

    packed = [
        _pad2(w0, c_pad, h_pad).astype(mm_dtype),                       # (Cp, Hp)
        _pad2(params["w_hh_0"].T, h_pad, h_pad).astype(mm_dtype),       # (Hp, Hp)
        _pad2((params["b_ih_0"] + params["b_hh_0"])[None, :], 1, h_pad),
    ]
    for l in range(1, num_layers):
        packed += [
            _pad2(params[f"w_ih_{l}"].T, h_pad, h_pad).astype(mm_dtype),
            _pad2(params[f"w_hh_{l}"].T, h_pad, h_pad).astype(mm_dtype),
            _pad2((params[f"b_ih_{l}"] + params[f"b_hh_{l}"])[None, :], 1, h_pad),
        ]
    packed += [
        _pad2(params["w_proj"].T, h_pad, c_pad).astype(mm_dtype),       # (Hp, Cp)
        _pad2(params["b_proj"][None, :], 1, c_pad),                     # (1, Cp)
    ]
    return packed


# ----------------------------------------------------------------------------
# Forward wrapper: pad batch to a sublane tile, pallas_call, slice padding off
# ----------------------------------------------------------------------------
def char_rnn_forward(x_tokens, packed_weights, *, num_layers, hidden_size,
                     num_classes, mm_dtype=jnp.bfloat16):
    batch, seq_len = x_tokens.shape
    b_pad = _round_up(max(batch, 8), 8)
    h_pad = _round_up(hidden_size, 128)
    c_pad = _round_up(num_classes, 128)

    # Time-major ids, padded batch rows filled with token 0 (sliced off later).
    ids = jnp.zeros((b_pad, seq_len), jnp.int32).at[:batch].set(
        x_tokens.astype(jnp.int32))
    ids_tm = ids.T.reshape(seq_len * b_pad, 1)

    vmem = pl.BlockSpec(memory_space=pltpu.MemorySpace.VMEM)
    n_in = 1 + len(packed_weights)

    out_flat, hn_pad = pl.pallas_call(
        functools.partial(_char_rnn_kernel, num_layers, seq_len, b_pad,
                          h_pad, c_pad, mm_dtype),
        out_shape=(
            jax.ShapeDtypeStruct((seq_len * b_pad, c_pad), jnp.float32),
            jax.ShapeDtypeStruct((num_layers, b_pad, h_pad), jnp.float32),
        ),
        in_specs=[vmem] * n_in,
        out_specs=(vmem, vmem),
    )(ids_tm, *packed_weights)

    # (seq*b_pad, Cp) time-major -> (batch*seq, C), matching the torch module.
    logits = out_flat.reshape(seq_len, b_pad, c_pad)
    logits = jnp.transpose(logits, (1, 0, 2))[:batch, :, :num_classes]
    logits = logits.reshape(batch * seq_len, num_classes)
    h_n = hn_pad[:, :batch, :hidden_size]
    return logits, h_n


# ----------------------------------------------------------------------------
# Pure-JAX reference (mirrors torch semantics, full-precision f32 matmuls)
# ----------------------------------------------------------------------------
def char_rnn_reference(x_tokens, params, *, num_layers, hidden_size, num_classes):
    hp = jax.lax.Precision.HIGHEST
    batch, seq_len = x_tokens.shape
    x = jnp.transpose(params["embedding"][x_tokens], (1, 0, 2)).astype(jnp.float32)
    h_n = []
    layer_in = x
    for l in range(num_layers):
        wih, whh = params[f"w_ih_{l}"], params[f"w_hh_{l}"]
        bih, bhh = params[f"b_ih_{l}"], params[f"b_hh_{l}"]
        h = jnp.zeros((batch, hidden_size), jnp.float32)
        outs = []
        for t in range(seq_len):
            h = jnp.tanh(jnp.dot(layer_in[t], wih.T, precision=hp) + bih
                         + jnp.dot(h, whh.T, precision=hp) + bhh)
            outs.append(h)
        h_n.append(h)
        layer_in = jnp.stack(outs)
    out = (jnp.dot(layer_in.reshape(seq_len * batch, hidden_size),
                   params["w_proj"].T, precision=hp) + params["b_proj"])
    out = out.reshape(seq_len, batch, num_classes)
    logits = jnp.transpose(out, (1, 0, 2)).reshape(-1, num_classes)
    return logits, jnp.stack(h_n)


# ----------------------------------------------------------------------------
# Deterministic parameter init (shapes follow CharRNN.__init__)
# ----------------------------------------------------------------------------
def init_params(key, num_classes, embed_dim, hidden_size, num_layers):
    keys = jax.random.split(key, 4 * num_layers + 3)
    k = iter(keys)
    params = {"embedding": jax.random.normal(next(k), (num_classes, embed_dim), jnp.float32)}
    bound = 1.0 / jnp.sqrt(hidden_size)
    for l in range(num_layers):
        in_l = embed_dim if l == 0 else hidden_size
        params[f"w_ih_{l}"] = jax.random.uniform(next(k), (hidden_size, in_l), jnp.float32, -bound, bound)
        params[f"w_hh_{l}"] = jax.random.uniform(next(k), (hidden_size, hidden_size), jnp.float32, -bound, bound)
        params[f"b_ih_{l}"] = jax.random.uniform(next(k), (hidden_size,), jnp.float32, -bound, bound)
        params[f"b_hh_{l}"] = jax.random.uniform(next(k), (hidden_size,), jnp.float32, -bound, bound)
    pb = 1.0 / jnp.sqrt(hidden_size)
    params["w_proj"] = jax.random.uniform(next(k), (num_classes, hidden_size), jnp.float32, -pb, pb)
    params["b_proj"] = jax.random.uniform(next(k), (num_classes,), jnp.float32, -pb, pb)
    return params


if __name__ == "__main__":
    # Small config: embed_dim must equal num_classes (nn.RNN input_size == num_classes).
    num_classes = 16
    embed_dim = 16
    hidden_size = 32
    num_layers = 2
    batch, seq_len = 2, 8

    key = jax.random.PRNGKey(0)
    pkey, xkey = jax.random.split(key)
    params = init_params(pkey, num_classes, embed_dim, hidden_size, num_layers)
    x_tokens = jax.random.randint(xkey, (batch, seq_len), 0, num_classes, dtype=jnp.int32)

    ref_logits, ref_hn = char_rnn_reference(
        x_tokens, params,
        num_layers=num_layers, hidden_size=hidden_size, num_classes=num_classes,
    )

    # ---- optimized configuration: bf16 MXU operands, f32 accumulate/tanh ----
    packed_bf16 = jax.tree_util.tree_map(
        jax.block_until_ready,
        pack_params(params, num_layers=num_layers, hidden_size=hidden_size,
                    num_classes=num_classes, mm_dtype=jnp.bfloat16))
    fwd_bf16 = jax.jit(functools.partial(
        char_rnn_forward, num_layers=num_layers, hidden_size=hidden_size,
        num_classes=num_classes, mm_dtype=jnp.bfloat16))
    logits, h_n = fwd_bf16(x_tokens, packed_bf16)
    jax.block_until_ready((logits, h_n))

    assert logits.shape == (batch * seq_len, num_classes), logits.shape
    assert h_n.shape == (num_layers, batch, hidden_size), h_n.shape
    assert jnp.allclose(logits, ref_logits, atol=5e-2, rtol=5e-2)
    assert jnp.allclose(h_n, ref_hn, atol=5e-2, rtol=5e-2)

    # ---- full-f32 MXU operands: near-exact agreement with the reference ----
    packed_f32 = pack_params(params, num_layers=num_layers, hidden_size=hidden_size,
                             num_classes=num_classes, mm_dtype=jnp.float32)
    fwd_f32 = jax.jit(functools.partial(
        char_rnn_forward, num_layers=num_layers, hidden_size=hidden_size,
        num_classes=num_classes, mm_dtype=jnp.float32))
    logits32, h_n32 = fwd_f32(x_tokens, packed_f32)
    jax.block_until_ready((logits32, h_n32))
    assert jnp.allclose(logits32, ref_logits, atol=1e-2, rtol=1e-2)
    assert jnp.allclose(h_n32, ref_hn, atol=1e-2, rtol=1e-2)

    print("KERNEL_OK")
</pallas_src>

<mosaic_0001>
module attributes {stable_mosaic.version = 11 : i64} {
  func.func @_char_rnn_kernel(%arg0: memref<64x1xi32, #tpu.memory_space<vmem>>, %arg1: memref<128x128xbf16, #tpu.memory_space<vmem>>, %arg2: memref<128x128xbf16, #tpu.memory_space<vmem>>, %arg3: memref<1x128xf32, #tpu.memory_space<vmem>>, %arg4: memref<128x128xbf16, #tpu.memory_space<vmem>>, %arg5: memref<128x128xbf16, #tpu.memory_space<vmem>>, %arg6: memref<1x128xf32, #tpu.memory_space<vmem>>, %arg7: memref<128x128xbf16, #tpu.memory_space<vmem>>, %arg8: memref<1x128xf32, #tpu.memory_space<vmem>>, %arg9: memref<64x128xf32, #tpu.memory_space<vmem>>, %arg10: memref<2x8x128xf32, #tpu.memory_space<vmem>>) attributes {dimension_semantics = [], scalar_prefetch = 0 : i64, scratch_operands = 0 : i64, tpu.core_type = #tpu.core_type<tc>} {
    %c0 = arith.constant 0 : index
    %c0_0 = arith.constant 0 : index
    %0 = vector.load %arg0[%c0, %c0_0] : memref<64x1xi32, #tpu.memory_space<vmem>>, vector<64x1xi32>
    %1 = tpu.iota {dimensions = array<i32: 1>} : vector<64x128xi32>
    %2 = vector.broadcast %0 : vector<64x1xi32> to vector<64x128xi32>
    %3 = arith.cmpi eq, %2, %1 : vector<64x128xi32>
    %4 = arith.extui %3 : vector<64x128xi1> to vector<64x128xi32>
    %5 = arith.sitofp %4 : vector<64x128xi32> to vector<64x128xf32>
    %6 = arith.truncf %5 : vector<64x128xf32> to vector<64x128xbf16>
    %c0_1 = arith.constant 0 : index
    %c0_2 = arith.constant 0 : index
    %7 = vector.load %arg1[%c0_1, %c0_2] : memref<128x128xbf16, #tpu.memory_space<vmem>>, vector<128x128xbf16>
    %cst = arith.constant dense<0.000000e+00> : vector<64x128xf32>
    %8 = tpu.matmul %6, %7, %cst {dimension_numbers = #tpu.dot_dimension_numbers<[1], [0], [0], [1], [0, 0, 1, 1], [], []>} : vector<64x128xbf16>, vector<128x128xbf16>, vector<64x128xf32> -> vector<64x128xf32>
    %c0_3 = arith.constant 0 : index
    %c0_4 = arith.constant 0 : index
    %9 = vector.load %arg3[%c0_3, %c0_4] : memref<1x128xf32, #tpu.memory_space<vmem>>, vector<1x128xf32>
    %10 = vector.broadcast %9 : vector<1x128xf32> to vector<64x128xf32>
    %11 = arith.addf %8, %10 : vector<64x128xf32>
    %c0_5 = arith.constant 0 : index
    %c0_6 = arith.constant 0 : index
    %12 = vector.load %arg2[%c0_5, %c0_6] : memref<128x128xbf16, #tpu.memory_space<vmem>>, vector<128x128xbf16>
    %cst_7 = arith.constant 0.000000e+00 : f32
    %13 = vector.broadcast %cst_7 : f32 to vector<8x128xf32>
    %14 = vector.extract_strided_slice %11 {offsets = [0, 0], sizes = [8, 128], strides = [1, 1]} : vector<64x128xf32> to vector<8x128xf32>
    %15 = arith.truncf %13 : vector<8x128xf32> to vector<8x128xbf16>
    %cst_8 = arith.constant dense<0.000000e+00> : vector<8x128xf32>
    %16 = tpu.matmul %15, %12, %cst_8 {dimension_numbers = #tpu.dot_dimension_numbers<[1], [0], [0], [1], [0, 0, 1, 1], [], []>} : vector<8x128xbf16>, vector<128x128xbf16>, vector<8x128xf32> -> vector<8x128xf32>
    %17 = arith.addf %14, %16 : vector<8x128xf32>
    %18 = math.tanh %17 : vector<8x128xf32>
    %19 = vector.extract_strided_slice %11 {offsets = [8, 0], sizes = [8, 128], strides = [1, 1]} : vector<64x128xf32> to vector<8x128xf32>
    %20 = arith.truncf %18 : vector<8x128xf32> to vector<8x128xbf16>
    %cst_9 = arith.constant dense<0.000000e+00> : vector<8x128xf32>
    %21 = tpu.matmul %20, %12, %cst_9 {dimension_numbers = #tpu.dot_dimension_numbers<[1], [0], [0], [1], [0, 0, 1, 1], [], []>} : vector<8x128xbf16>, vector<128x128xbf16>, vector<8x128xf32> -> vector<8x128xf32>
    %22 = arith.addf %19, %21 : vector<8x128xf32>
    %23 = math.tanh %22 : vector<8x128xf32>
    %24 = vector.extract_strided_slice %11 {offsets = [16, 0], sizes = [8, 128], strides = [1, 1]} : vector<64x128xf32> to vector<8x128xf32>
    %25 = arith.truncf %23 : vector<8x128xf32> to vector<8x128xbf16>
    %cst_10 = arith.constant dense<0.000000e+00> : vector<8x128xf32>
    %26 = tpu.matmul %25, %12, %cst_10 {dimension_numbers = #tpu.dot_dimension_numbers<[1], [0], [0], [1], [0, 0, 1, 1], [], []>} : vector<8x128xbf16>, vector<128x128xbf16>, vector<8x128xf32> -> vector<8x128xf32>
    %27 = arith.addf %24, %26 : vector<8x128xf32>
    %28 = math.tanh %27 : vector<8x128xf32>
    %29 = vector.extract_strided_slice %11 {offsets = [24, 0], sizes = [8, 128], strides = [1, 1]} : vector<64x128xf32> to vector<8x128xf32>
    %30 = arith.truncf %28 : vector<8x128xf32> to vector<8x128xbf16>
    %cst_11 = arith.constant dense<0.000000e+00> : vector<8x128xf32>
    %31 = tpu.matmul %30, %12, %cst_11 {dimension_numbers = #tpu.dot_dimension_numbers<[1], [0], [0], [1], [0, 0, 1, 1], [], []>} : vector<8x128xbf16>, vector<128x128xbf16>, vector<8x128xf32> -> vector<8x128xf32>
    %32 = arith.addf %29, %31 : vector<8x128xf32>
    %33 = math.tanh %32 : vector<8x128xf32>
    %34 = vector.extract_strided_slice %11 {offsets = [32, 0], sizes = [8, 128], strides = [1, 1]} : vector<64x128xf32> to vector<8x128xf32>
    %35 = arith.truncf %33 : vector<8x128xf32> to vector<8x128xbf16>
    %cst_12 = arith.constant dense<0.000000e+00> : vector<8x128xf32>
    %36 = tpu.matmul %35, %12, %cst_12 {dimension_numbers = #tpu.dot_dimension_numbers<[1], [0], [0], [1], [0, 0, 1, 1], [], []>} : vector<8x128xbf16>, vector<128x128xbf16>, vector<8x128xf32> -> vector<8x128xf32>
    %37 = arith.addf %34, %36 : vector<8x128xf32>
    %38 = math.tanh %37 : vector<8x128xf32>
    %39 = vector.extract_strided_slice %11 {offsets = [40, 0], sizes = [8, 128], strides = [1, 1]} : vector<64x128xf32> to vector<8x128xf32>
    %40 = arith.truncf %38 : vector<8x128xf32> to vector<8x128xbf16>
    %cst_13 = arith.constant dense<0.000000e+00> : vector<8x128xf32>
    %41 = tpu.matmul %40, %12, %cst_13 {dimension_numbers = #tpu.dot_dimension_numbers<[1], [0], [0], [1], [0, 0, 1, 1], [], []>} : vector<8x128xbf16>, vector<128x128xbf16>, vector<8x128xf32> -> vector<8x128xf32>
    %42 = arith.addf %39, %41 : vector<8x128xf32>
    %43 = math.tanh %42 : vector<8x128xf32>
    %44 = vector.extract_strided_slice %11 {offsets = [48, 0], sizes = [8, 128], strides = [1, 1]} : vector<64x128xf32> to vector<8x128xf32>
    %45 = arith.truncf %43 : vector<8x128xf32> to vector<8x128xbf16>
    %cst_14 = arith.constant dense<0.000000e+00> : vector<8x128xf32>
    %46 = tpu.matmul %45, %12, %cst_14 {dimension_numbers = #tpu.dot_dimension_numbers<[1], [0], [0], [1], [0, 0, 1, 1], [], []>} : vector<8x128xbf16>, vector<128x128xbf16>, vector<8x128xf32> -> vector<8x128xf32>
    %47 = arith.addf %44, %46 : vector<8x128xf32>
    %48 = math.tanh %47 : vector<8x128xf32>
    %49 = vector.extract_strided_slice %11 {offsets = [56, 0], sizes = [8, 128], strides = [1, 1]} : vector<64x128xf32> to vector<8x128xf32>
    %50 = arith.truncf %48 : vector<8x128xf32> to vector<8x128xbf16>
    %cst_15 = arith.constant dense<0.000000e+00> : vector<8x128xf32>
    %51 = tpu.matmul %50, %12, %cst_15 {dimension_numbers = #tpu.dot_dimension_numbers<[1], [0], [0], [1], [0, 0, 1, 1], [], []>} : vector<8x128xbf16>, vector<128x128xbf16>, vector<8x128xf32> -> vector<8x128xf32>
    %52 = arith.addf %49, %51 : vector<8x128xf32>
    %53 = math.tanh %52 : vector<8x128xf32>
    %c0_16 = arith.constant 0 : index
    %c0_17 = arith.constant 0 : index
    %c0_18 = arith.constant 0 : index
    %54 = vector.load %arg10[%c0_16, %c0_17, %c0_18] : memref<2x8x128xf32, #tpu.memory_space<vmem>>, vector<1x8x128xf32>
    %55 = vector.shape_cast %54 : vector<1x8x128xf32> to vector<8x128xf32>
    %56 = vector.shape_cast %53 : vector<8x128xf32> to vector<1x8x128xf32>
    tpu.vector_store %arg10[%c0_16, %c0_17, %c0_18], %56 {strides = array<i32>} : memref<2x8x128xf32, #tpu.memory_space<vmem>>, vector<1x8x128xf32>,
    %57 = tpu.concatenate %18, %23, %28, %33, %38, %43, %48, %53 in 0 : vector<8x128xf32>, vector<8x128xf32>, vector<8x128xf32>, vector<8x128xf32>, vector<8x128xf32>, vector<8x128xf32>, vector<8x128xf32>, vector<8x128xf32> -> vector<64x128xf32>
    %58 = arith.truncf %57 : vector<64x128xf32> to vector<64x128xbf16>
    %c0_19 = arith.constant 0 : index
    %c0_20 = arith.constant 0 : index
    %59 = vector.load %arg4[%c0_19, %c0_20] : memref<128x128xbf16, #tpu.memory_space<vmem>>, vector<128x128xbf16>
    %cst_21 = arith.constant dense<0.000000e+00> : vector<64x128xf32>
    %60 = tpu.matmul %58, %59, %cst_21 {dimension_numbers = #tpu.dot_dimension_numbers<[1], [0], [0], [1], [0, 0, 1, 1], [], []>} : vector<64x128xbf16>, vector<128x128xbf16>, vector<64x128xf32> -> vector<64x128xf32>
    %c0_22 = arith.constant 0 : index
    %c0_23 = arith.constant 0 : index
    %61 = vector.load %arg6[%c0_22, %c0_23] : memref<1x128xf32, #tpu.memory_space<vmem>>, vector<1x128xf32>
    %62 = vector.broadcast %61 : vector<1x128xf32> to vector<64x128xf32>
    %63 = arith.addf %60, %62 : vector<64x128xf32>
    %c0_24 = arith.constant 0 : index
    %c0_25 = arith.constant 0 : index
    %64 = vector.load %arg5[%c0_24, %c0_25] : memref<128x128xbf16, #tpu.memory_space<vmem>>, vector<128x128xbf16>
    %cst_26 = arith.constant 0.000000e+00 : f32
    %65 = vector.broadcast %cst_26 : f32 to vector<8x128xf32>
    %66 = vector.extract_strided_slice %63 {offsets = [0, 0], sizes = [8, 128], strides = [1, 1]} : vector<64x128xf32> to vector<8x128xf32>
    %67 = arith.truncf %65 : vector<8x128xf32> to vector<8x128xbf16>
    %cst_27 = arith.constant dense<0.000000e+00> : vector<8x128xf32>
    %68 = tpu.matmul %67, %64, %cst_27 {dimension_numbers = #tpu.dot_dimension_numbers<[1], [0], [0], [1], [0, 0, 1, 1], [], []>} : vector<8x128xbf16>, vector<128x128xbf16>, vector<8x128xf32> -> vector<8x128xf32>
    %69 = arith.addf %66, %68 : vector<8x128xf32>
    %70 = math.tanh %69 : vector<8x128xf32>
    %71 = vector.extract_strided_slice %63 {offsets = [8, 0], sizes = [8, 128], strides = [1, 1]} : vector<64x128xf32> to vector<8x128xf32>
    %72 = arith.truncf %70 : vector<8x128xf32> to vector<8x128xbf16>
    %cst_28 = arith.constant dense<0.000000e+00> : vector<8x128xf32>
    %73 = tpu.matmul %72, %64, %cst_28 {dimension_numbers = #tpu.dot_dimension_numbers<[1], [0], [0], [1], [0, 0, 1, 1], [], []>} : vector<8x128xbf16>, vector<128x128xbf16>, vector<8x128xf32> -> vector<8x128xf32>
    %74 = arith.addf %71, %73 : vector<8x128xf32>
    %75 = math.tanh %74 : vector<8x128xf32>
    %76 = vector.extract_strided_slice %63 {offsets = [16, 0], sizes = [8, 128], strides = [1, 1]} : vector<64x128xf32> to vector<8x128xf32>
    %77 = arith.truncf %75 : vector<8x128xf32> to vector<8x128xbf16>
    %cst_29 = arith.constant dense<0.000000e+00> : vector<8x128xf32>
    %78 = tpu.matmul %77, %64, %cst_29 {dimension_numbers = #tpu.dot_dimension_numbers<[1], [0], [0], [1], [0, 0, 1, 1], [], []>} : vector<8x128xbf16>, vector<128x128xbf16>, vector<8x128xf32> -> vector<8x128xf32>
    %79 = arith.addf %76, %78 : vector<8x128xf32>
    %80 = math.tanh %79 : vector<8x128xf32>
    %81 = vector.extract_strided_slice %63 {offsets = [24, 0], sizes = [8, 128], strides = [1, 1]} : vector<64x128xf32> to vector<8x128xf32>
    %82 = arith.truncf %80 : vector<8x128xf32> to vector<8x128xbf16>
    %cst_30 = arith.constant dense<0.000000e+00> : vector<8x128xf32>
    %83 = tpu.matmul %82, %64, %cst_30 {dimension_numbers = #tpu.dot_dimension_numbers<[1], [0], [0], [1], [0, 0, 1, 1], [], []>} : vector<8x128xbf16>, vector<128x128xbf16>, vector<8x128xf32> -> vector<8x128xf32>
    %84 = arith.addf %81, %83 : vector<8x128xf32>
    %85 = math.tanh %84 : vector<8x128xf32>
    %86 = vector.extract_strided_slice %63 {offsets = [32, 0], sizes = [8, 128], strides = [1, 1]} : vector<64x128xf32> to vector<8x128xf32>
    %87 = arith.truncf %85 : vector<8x128xf32> to vector<8x128xbf16>
    %cst_31 = arith.constant dense<0.000000e+00> : vector<8x128xf32>
    %88 = tpu.matmul %87, %64, %cst_31 {dimension_numbers = #tpu.dot_dimension_numbers<[1], [0], [0], [1], [0, 0, 1, 1], [], []>} : vector<8x128xbf16>, vector<128x128xbf16>, vector<8x128xf32> -> vector<8x128xf32>
    %89 = arith.addf %86, %88 : vector<8x128xf32>
    %90 = math.tanh %89 : vector<8x128xf32>
    %91 = vector.extract_strided_slice %63 {offsets = [40, 0], sizes = [8, 128], strides = [1, 1]} : vector<64x128xf32> to vector<8x128xf32>
    %92 = arith.truncf %90 : vector<8x128xf32> to vector<8x128xbf16>
    %cst_32 = arith.constant dense<0.000000e+00> : vector<8x128xf32>
    %93 = tpu.matmul %92, %64, %cst_32 {dimension_numbers = #tpu.dot_dimension_numbers<[1], [0], [0], [1], [0, 0, 1, 1], [], []>} : vector<8x128xbf16>, vector<128x128xbf16>, vector<8x128xf32> -> vector<8x128xf32>
    %94 = arith.addf %91, %93 : vector<8x128xf32>
    %95 = math.tanh %94 : vector<8x128xf32>
    %96 = vector.extract_strided_slice %63 {offsets = [48, 0], sizes = [8, 128], strides = [1, 1]} : vector<64x128xf32> to vector<8x128xf32>
    %97 = arith.truncf %95 : vector<8x128xf32> to vector<8x128xbf16>
    %cst_33 = arith.constant dense<0.000000e+00> : vector<8x128xf32>
    %98 = tpu.matmul %97, %64, %cst_33 {dimension_numbers = #tpu.dot_dimension_numbers<[1], [0], [0], [1], [0, 0, 1, 1], [], []>} : vector<8x128xbf16>, vector<128x128xbf16>, vector<8x128xf32> -> vector<8x128xf32>
    %99 = arith.addf %96, %98 : vector<8x128xf32>
    %100 = math.tanh %99 : vector<8x128xf32>
    %101 = vector.extract_strided_slice %63 {offsets = [56, 0], sizes = [8, 128], strides = [1, 1]} : vector<64x128xf32> to vector<8x128xf32>
    %102 = arith.truncf %100 : vector<8x128xf32> to vector<8x128xbf16>
    %cst_34 = arith.constant dense<0.000000e+00> : vector<8x128xf32>
    %103 = tpu.matmul %102, %64, %cst_34 {dimension_numbers = #tpu.dot_dimension_numbers<[1], [0], [0], [1], [0, 0, 1, 1], [], []>} : vector<8x128xbf16>, vector<128x128xbf16>, vector<8x128xf32> -> vector<8x128xf32>
    %104 = arith.addf %101, %103 : vector<8x128xf32>
    %105 = math.tanh %104 : vector<8x128xf32>
    %c1 = arith.constant 1 : index
    %c0_35 = arith.constant 0 : index
    %c0_36 = arith.constant 0 : index
    %106 = vector.load %arg10[%c1, %c0_35, %c0_36] : memref<2x8x128xf32, #tpu.memory_space<vmem>>, vector<1x8x128xf32>
    %107 = vector.shape_cast %106 : vector<1x8x128xf32> to vector<8x128xf32>
    %108 = vector.shape_cast %105 : vector<8x128xf32> to vector<1x8x128xf32>
    tpu.vector_store %arg10[%c1, %c0_35, %c0_36], %108 {strides = array<i32>} : memref<2x8x128xf32, #tpu.memory_space<vmem>>, vector<1x8x128xf32>,
    %109 = tpu.concatenate %70, %75, %80, %85, %90, %95, %100, %105 in 0 : vector<8x128xf32>, vector<8x128xf32>, vector<8x128xf32>, vector<8x128xf32>, vector<8x128xf32>, vector<8x128xf32>, vector<8x128xf32>, vector<8x128xf32> -> vector<64x128xf32>
    %110 = arith.truncf %109 : vector<64x128xf32> to vector<64x128xbf16>
    %c0_37 = arith.constant 0 : index
    %c0_38 = arith.constant 0 : index
    %111 = vector.load %arg7[%c0_37, %c0_38] : memref<128x128xbf16, #tpu.memory_space<vmem>>, vector<128x128xbf16>
    %cst_39 = arith.constant dense<0.000000e+00> : vector<64x128xf32>
    %112 = tpu.matmul %110, %111, %cst_39 {dimension_numbers = #tpu.dot_dimension_numbers<[1], [0], [0], [1], [0, 0, 1, 1], [], []>} : vector<64x128xbf16>, vector<128x128xbf16>, vector<64x128xf32> -> vector<64x128xf32>
    %c0_40 = arith.constant 0 : index
    %c0_41 = arith.constant 0 : index
    %113 = vector.load %arg8[%c0_40, %c0_41] : memref<1x128xf32, #tpu.memory_space<vmem>>, vector<1x128xf32>
    %114 = vector.broadcast %113 : vector<1x128xf32> to vector<64x128xf32>
    %115 = arith.addf %112, %114 : vector<64x128xf32>
    %c0_42 = arith.constant 0 : index
    %c0_43 = arith.constant 0 : index
    %116 = vector.load %arg9[%c0_42, %c0_43] : memref<64x128xf32, #tpu.memory_space<vmem>>, vector<64x128xf32>
    tpu.vector_store %arg9[%c0_42, %c0_43], %115 {strides = array<i32>} : memref<64x128xf32, #tpu.memory_space<vmem>>, vector<64x128xf32>,
    return
  }
}

</mosaic_0001>

<llo_original>
// kernel: char_rnn_forward.1
$region0: #{char_rnn_forward.1}
  #allocation0 [shape = 'u32[]', space=smem, size = 0x4, offset = 0x4, fixed_abs, tag = 'smem constant byte address 0x4 - core index']
  #allocation1 [shape = 'u32[144,128]{1,0:T(1,128)}', space=vmem, size = 0x12000, scoped, tag = 'internal scratch']
  %s0 = inlined_call_operand.vmem [shape: s32[64,1], index: 0, kind: input, shape index: {}]
  %s1 = inlined_call_operand.vmem [shape: bf16[128,128], index: 1, kind: input, shape index: {}]
  %s2 = inlined_call_operand.hbm [shape: bf16[128,128], index: 2, kind: input, shape index: {}]
  %s3 = inlined_call_operand.vmem [shape: f32[1,128], index: 3, kind: input, shape index: {}]
  %s4 = inlined_call_operand.hbm [shape: bf16[128,128], index: 4, kind: input, shape index: {}]
  %s5 = inlined_call_operand.hbm [shape: bf16[128,128], index: 5, kind: input, shape index: {}]
  %s6 = inlined_call_operand.vmem [shape: f32[1,128], index: 6, kind: input, shape index: {}]
  %s7 = inlined_call_operand.hbm [shape: bf16[128,128], index: 7, kind: input, shape index: {}]
  %s8 = inlined_call_operand.vmem [shape: f32[1,128], index: 8, kind: input, shape index: {}]
  %s9 = inlined_call_operand.vmem [shape: f32[64,128], index: 9, kind: output, shape index: {0}]
  %s10 = inlined_call_operand.vmem [shape: f32[2,8,128], index: 10, kind: output, shape index: {1}]
  %11 = xla_tuple %s9, %s10
  %s12 = sld [smem:[#allocation0]]
  $region70: #{char_rnn_forward.1} parent=0
    _
  %s14 = ssub.s32 1, %s12
  %s15 = scalar_select 0, %s14, %s12
  $region1: #{char_rnn_forward.1} parent=0
    #allocation2 [shape = 'u8[32768]{0}', space=vmem, size = 0x8000, scoped, tag = 'input window, operand 2, single buffered']
    #allocation3 [shape = 's32[1]{0}', space=sflag, size = 0x4, scoped, tag = 'scoped memory for char_rnn_forward.1']
    #allocation4 [shape = 'u8[32768]{0}', space=vmem, size = 0x8000, scoped, tag = 'input window, operand 4, single buffered']
    #allocation5 [shape = 's32[1]{0}', space=sflag, size = 0x4, scoped, tag = 'scoped memory for char_rnn_forward.1']
    #allocation6 [shape = 'u8[32768]{0}', space=vmem, size = 0x8000, scoped, tag = 'input window, operand 5, single buffered']
    #allocation7 [shape = 'u8[32768]{0}', space=vmem, size = 0x8000, scoped, tag = 'input window, operand 7, single buffered']
    #allocation8 [shape = 's32[1]{0}', space=sflag, size = 0x4, scoped, tag = 'scoped memory for char_rnn_forward.1']
    %16 = vsyncpa [#allocation3], 0
    %17 = vsyncpa [#allocation5], 0
    %18 = vsyncpa [#allocation8], 0
    // Predicated region
    $region2: #{char_rnn_forward.1} parent=1 // pred_check
      _
    $region3: #{char_rnn_forward.1} parent=1 // pred_check_branch
      %20 = sbr.rel (0) target = $region5
    $region4: #{char_rnn_forward.1} parent=1 // pred_region
      _
    $region5: #{char_rnn_forward.1} parent=1 // pred_fallthru
      _
    // Predicated region
    $region6: #{char_rnn_forward.1} parent=1 // pred_check
      _
    $region7: #{char_rnn_forward.1} parent=1 // pred_check_branch
      %22 = sbr.rel (0) target = $region9
    $region8: #{char_rnn_forward.1} parent=1 // pred_region
      _
    $region9: #{char_rnn_forward.1} parent=1 // pred_fallthru
      _
    // Predicated region
    $region10: #{char_rnn_forward.1} parent=1 // pred_check
      _
    $region11: #{char_rnn_forward.1} parent=1 // pred_check_branch
      %24 = sbr.rel (0) target = $region13
    $region12: #{char_rnn_forward.1} parent=1 // pred_region
      %s26 = ssub.s32 1024, 1024
      %27 = vsyncadd [#allocation3], %s26
      %s28 = sshll.u32 [#allocation2], 4
      %s29 = int_to_ptr.vmem [resolvable:$true] %s28
      %34 = dma.hbm_to_vmem [thread:$0]  %s2, 1024, %s29, [#allocation3], 64, 64, 4
    $region13: #{char_rnn_forward.1} parent=1 // pred_fallthru
      _
    // Predicated region
    $region14: #{char_rnn_forward.1} parent=1 // pred_check
      _
    $region15: #{char_rnn_forward.1} parent=1 // pred_check_branch
      %36 = sbr.rel (0) target = $region17
    $region16: #{char_rnn_forward.1} parent=1 // pred_region
      _
    $region17: #{char_rnn_forward.1} parent=1 // pred_fallthru
      _
    // Predicated region
    $region18: #{char_rnn_forward.1} parent=1 // pred_check
      _
    $region19: #{char_rnn_forward.1} parent=1 // pred_check_branch
      %38 = sbr.rel (0) target = $region21
    $region20: #{char_rnn_forward.1} parent=1 // pred_region
      %s40 = ssub.s32 1024, 1024
      %41 = vsyncadd [#allocation5], %s40
      %s42 = sshll.u32 [#allocation4], 4
      %s43 = int_to_ptr.vmem [resolvable:$true] %s42
      %48 = dma.hbm_to_vmem [thread:$0]  %s4, 1024, %s43, [#allocation5], 64, 64, 4
    $region21: #{char_rnn_forward.1} parent=1 // pred_fallthru
      _
    // Predicated region
    $region22: #{char_rnn_forward.1} parent=1 // pred_check
      _
    $region23: #{char_rnn_forward.1} parent=1 // pred_check_branch
      %50 = sbr.rel (0) target = $region25
    $region24: #{char_rnn_forward.1} parent=1 // pred_region
      %s52 = ssub.s32 1024, 1024
      %53 = vsyncadd [#allocation5], %s52
      %s54 = sshll.u32 [#allocation6], 4
      %s55 = int_to_ptr.vmem [resolvable:$true] %s54
      %60 = dma.hbm_to_vmem [thread:$0]  %s5, 1024, %s55, [#allocation5], 64, 64, 4
    $region25: #{char_rnn_forward.1} parent=1 // pred_fallthru
      _
    // Predicated region
    $region26: #{char_rnn_forward.1} parent=1 // pred_check
      _
    $region27: #{char_rnn_forward.1} parent=1 // pred_check_branch
      %62 = sbr.rel (0) target = $region29
    $region28: #{char_rnn_forward.1} parent=1 // pred_region
      _
    $region29: #{char_rnn_forward.1} parent=1 // pred_fallthru
      _
    // Predicated region
    $region30: #{char_rnn_forward.1} parent=1 // pred_check
      _
    $region31: #{char_rnn_forward.1} parent=1 // pred_check_branch
      %64 = sbr.rel (0) target = $region33
    $region32: #{char_rnn_forward.1} parent=1 // pred_region
      %s66 = ssub.s32 1024, 1024
      %67 = vsyncadd [#allocation8], %s66
      %s68 = sshll.u32 [#allocation7], 4
      %s69 = int_to_ptr.vmem [resolvable:$true] %s68
      %74 = dma.hbm_to_vmem [thread:$0]  %s7, 1024, %s69, [#allocation8], 64, 64, 4
    $region33: #{char_rnn_forward.1} parent=1 // pred_fallthru
      _
    // Predicated region
    $region34: #{char_rnn_forward.1} parent=1 // pred_check
      _
    $region35: #{char_rnn_forward.1} parent=1 // pred_check_branch
      %76 = sbr.rel (0) target = $region37
    $region36: #{char_rnn_forward.1} parent=1 // pred_region
      _
    $region37: #{char_rnn_forward.1} parent=1 // pred_fallthru
      _
    // Predicated region
    $region38: #{char_rnn_forward.1} parent=1 // pred_check
      _
    $region39: #{char_rnn_forward.1} parent=1 // pred_check_branch
      %78 = sbr.rel (0) target = $region41
    $region40: #{char_rnn_forward.1} parent=1 // pred_region
      %79 = dma.done [#allocation3], 1024
    $region41: #{char_rnn_forward.1} parent=1 // pred_fallthru
      _
    // Predicated region
    $region42: #{char_rnn_forward.1} parent=1 // pred_check
      _
    $region43: #{char_rnn_forward.1} parent=1 // pred_check_branch
      %81 = sbr.rel (0) target = $region45
    $region44: #{char_rnn_forward.1} parent=1 // pred_region
      %82 = dma.done [#allocation5], 1024
    $region45: #{char_rnn_forward.1} parent=1 // pred_fallthru
      _
    // Predicated region
    $region46: #{char_rnn_forward.1} parent=1 // pred_check
      _
    $region47: #{char_rnn_forward.1} parent=1 // pred_check_branch
      %84 = sbr.rel (0) target = $region49
    $region48: #{char_rnn_forward.1} parent=1 // pred_region
      %85 = dma.done [#allocation5], 1024
    $region49: #{char_rnn_forward.1} parent=1 // pred_fallthru
      _
    // Predicated region
    $region50: #{char_rnn_forward.1} parent=1 // pred_check
      _
    $region51: #{char_rnn_forward.1} parent=1 // pred_check_branch
      %87 = sbr.rel (0) target = $region53
    $region52: #{char_rnn_forward.1} parent=1 // pred_region
      %88 = dma.done [#allocation8], 1024
    $region53: #{char_rnn_forward.1} parent=1 // pred_fallthru
      _
    %v90 = vld [vmem:[%s0] sm:$0xff]
    %v91 = vld [vmem:[%s0 + $0x8] sm:$0xff]
    %v92 = vld [vmem:[%s0 + $0x10] sm:$0xff]
    %v93 = vld [vmem:[%s0 + $0x18] sm:$0xff]
    %v94 = vld [vmem:[%s0 + $0x20] sm:$0xff]
    %v95 = vld [vmem:[%s0 + $0x28] sm:$0xff]
    %v96 = vld [vmem:[%s0 + $0x30] sm:$0xff]
    %v97 = vld [vmem:[%s0 + $0x38] sm:$0xff]
    %v98 = vlaneseq
    %v99 = vand.u32 %v98, 127
    %100 = vset.pattern.permute.xlu0 0
    %101 = vperm.xlu0 %100, %v90
    %v102 = vpop.permute.xlu0 %101
    %103 = vset.pattern.permute.xlu0 0
    %104 = vperm.xlu0 %103, %v91
    %v105 = vpop.permute.xlu0 %104
    %106 = vset.pattern.permute.xlu0 0
    %107 = vperm.xlu0 %106, %v92
    %v108 = vpop.permute.xlu0 %107
    %109 = vset.pattern.permute.xlu0 0
    %110 = vperm.xlu0 %109, %v93
    %v111 = vpop.permute.xlu0 %110
    %112 = vset.pattern.permute.xlu0 0
    %113 = vperm.xlu0 %112, %v94
    %v114 = vpop.permute.xlu0 %113
    %115 = vset.pattern.permute.xlu0 0
    %116 = vperm.xlu0 %115, %v95
    %v117 = vpop.permute.xlu0 %116
    %118 = vset.pattern.permute.xlu0 0
    %119 = vperm.xlu0 %118, %v96
    %v120 = vpop.permute.xlu0 %119
    %121 = vset.pattern.permute.xlu0 0
    %122 = vperm.xlu0 %121, %v97
    %v123 = vpop.permute.xlu0 %122
    %vm124 = vcmp.eq.s32.totalorder %v102, %v99
    %vm125 = vcmp.eq.s32.totalorder %v105, %v99
    %vm126 = vcmp.eq.s32.totalorder %v108, %v99
    %vm127 = vcmp.eq.s32.totalorder %v111, %v99
    %vm128 = vcmp.eq.s32.totalorder %v114, %v99
    %vm129 = vcmp.eq.s32.totalorder %v117, %v99
    %vm130 = vcmp.eq.s32.totalorder %v120, %v99
    %vm131 = vcmp.eq.s32.totalorder %v123, %v99
    %v132 = vsel %vm124, 1, 0
    %v133 = vsel %vm125, 1, 0
    %v134 = vsel %vm126, 1, 0
    %v135 = vsel %vm127, 1, 0
    %v136 = vsel %vm128, 1, 0
    %v137 = vsel %vm129, 1, 0
    %v138 = vsel %vm130, 1, 0
    %v139 = vsel %vm131, 1, 0
    %v140 = vcvt.s32.f32 %v132
    %v141 = vcvt.s32.f32 %v133
    %v142 = vcvt.s32.f32 %v134
    %v143 = vcvt.s32.f32 %v135
    %v144 = vcvt.s32.f32 %v136
    %v145 = vcvt.s32.f32 %v137
    %v146 = vcvt.s32.f32 %v138
    %v147 = vcvt.s32.f32 %v139
    %v148 = vpack.c.bf16 %v141, %v140
    %v149 = vpack.c.bf16 %v143, %v142
    %v150 = vpack.c.bf16 %v145, %v144
    %v151 = vpack.c.bf16 %v147, %v146
    %v152 = vld [vmem:[%s1] sm:$0xf]
    %v153 = vld [vmem:[%s1 + $0x4] sm:$0xf]
    %v154 = vld [vmem:[%s1 + $0x8] sm:$0xf]
    %v155 = vld [vmem:[%s1 + $0xc] sm:$0xf]
    %v156 = vld [vmem:[%s1 + $0x10] sm:$0xf]
    %v157 = vld [vmem:[%s1 + $0x14] sm:$0xf]
    %v158 = vld [vmem:[%s1 + $0x18] sm:$0xf]
    %v159 = vld [vmem:[%s1 + $0x1c] sm:$0xf]
    %v160 = vld [vmem:[%s1 + $0x20] sm:$0xf]
    %v161 = vld [vmem:[%s1 + $0x24] sm:$0xf]
    %v162 = vld [vmem:[%s1 + $0x28] sm:$0xf]
    %v163 = vld [vmem:[%s1 + $0x2c] sm:$0xf]
    %v164 = vld [vmem:[%s1 + $0x30] sm:$0xf]
    %v165 = vld [vmem:[%s1 + $0x34] sm:$0xf]
    %v166 = vld [vmem:[%s1 + $0x38] sm:$0xf]
    %v167 = vld [vmem:[%s1 + $0x3c] sm:$0xf]
    %v168 = vld [vmem:[%s3] sm:$0x1]
    %v170 = vlaneseq
    %v171 = vshrl.u32 %v170, 7
    %v172 = vsub.s32 0, %v171
    %v173 = vrot.slane %v168, %v172
    %v191 = vunpack.c.l.b16 %v152
    %v192 = vunpack.c.l.b16 %v153
    %v193 = vunpack.c.l.b16 %v154
    %v194 = vunpack.c.l.b16 %v155
    %v195 = vunpack.c.l.b16 %v156
    %v196 = vunpack.c.l.b16 %v157
    %v197 = vunpack.c.l.b16 %v158
    %v198 = vunpack.c.l.b16 %v159
    %v199 = vunpack.c.l.b16 %v160
    %v200 = vunpack.c.l.b16 %v161
    %v201 = vunpack.c.l.b16 %v162
    %v202 = vunpack.c.l.b16 %v163
    %v203 = vunpack.c.l.b16 %v164
    %v204 = vunpack.c.l.b16 %v165
    %v205 = vunpack.c.l.b16 %v166
    %v206 = vunpack.c.l.b16 %v167
    %v207 = vpack.c.b16 %v192, %v191
    %v208 = vpack.c.b16 %v194, %v193
    %v209 = vpack.c.b16 %v196, %v195
    %v210 = vpack.c.b16 %v198, %v197
    %v211 = vpack.c.b16 %v200, %v199
    %v212 = vpack.c.b16 %v202, %v201
    %v213 = vpack.c.b16 %v204, %v203
    %v214 = vpack.c.b16 %v206, %v205
    %223 = vmatprep.subr.bf16.mxu0 0
    %224 = vmatpush1.bf16.msra.mxu0 %v214
    %225 = vmatprep.subr.bf16.mxu0 0
    %226 = vmatpush1.bf16.msra.mxu0 %v213
    %227 = vmatprep.subr.bf16.mxu0 0
    %228 = vmatpush1.bf16.msra.mxu0 %v212
    %229 = vmatprep.subr.bf16.mxu0 0
    %230 = vmatpush1.bf16.msra.mxu0 %v211
    %231 = vmatprep.subr.bf16.mxu0 0
    %232 = vmatpush1.bf16.msra.mxu0 %v210
    %233 = vmatprep.subr.bf16.mxu0 0
    %234 = vmatpush1.bf16.msra.mxu0 %v209
    %235 = vmatprep.subr.bf16.mxu0 0
    %236 = vmatpush1.bf16.msra.mxu0 %v208
    %237 = vmatprep.subr.bf16.mxu0 0
    %238 = vmatpush1.bf16.msra.mxu0 %v207
    %239 = vmatprep.subr.bf16.mxu0 0
    %240 = vmatpush2.bf16.msra.mxu0 0
    %241 = vmatprep.subr.bf16.mxu0 0
    %242 = vmatpush2.bf16.msra.mxu0 0
    %243 = vmatprep.subr.bf16.mxu0 0
    %244 = vmatpush2.bf16.msra.mxu0 0
    %245 = vmatprep.subr.bf16.mxu0 0
    %246 = vmatpush2.bf16.msra.mxu0 0
    %247 = vmatprep.subr.bf16.mxu0 0
    %248 = vmatpush2.bf16.msra.mxu0 0
    %249 = vmatprep.subr.bf16.mxu0 0
    %250 = vmatpush2.bf16.msra.mxu0 0
    %251 = vmatprep.subr.bf16.mxu0 0
    %252 = vmatpush2.bf16.msra.mxu0 0
    %253 = vmatprep.subr.bf16.mxu0 0
    %254 = vmatpush2.bf16.msra.mxu0 0
    %255 = vmatprep.mubr.bf16.mxu0 0
    %256 = vmatmul.mubr.bf16.gmra.mxu0 %v148
    %v257 = vpop.f32.mrf.mxu0
    %v258 = vadd.f32 %v173, %v257
    %v259 = vpop.f32.mrf.mxu0
    %v260 = vpop.f32.mrf.mxu0
    %v261 = vadd.f32 %v173, %v260
    %v262 = vpop.f32.mrf.mxu0
    %263 = vmatprep.mubr.bf16.mxu0 0
    %264 = vmatmul.mubr.bf16.gmra.mxu0 %v149
    %v265 = vpop.f32.mrf.mxu0
    %v266 = vadd.f32 %v173, %v265
    %v267 = vpop.f32.mrf.mxu0
    %v268 = vpop.f32.mrf.mxu0
    %v269 = vadd.f32 %v173, %v268
    %v270 = vpop.f32.mrf.mxu0
    %271 = vmatprep.mubr.bf16.mxu0 0
    %272 = vmatmul.mubr.bf16.gmra.mxu0 %v150
    %v273 = vpop.f32.mrf.mxu0
    %v274 = vadd.f32 %v173, %v273
    %v275 = vpop.f32.mrf.mxu0
    %v276 = vpop.f32.mrf.mxu0
    %v277 = vadd.f32 %v173, %v276
    %v278 = vpop.f32.mrf.mxu0
    %279 = vmatprep.mubr.bf16.mxu0 0
    %280 = vmatmul.mubr.bf16.gmra.mxu0 %v151
    %v281 = vpop.f32.mrf.mxu0
    %v282 = vadd.f32 %v173, %v281
    %v283 = vpop.f32.mrf.mxu0
    %v284 = vpop.f32.mrf.mxu0
    %v285 = vadd.f32 %v173, %v284
    %v286 = vpop.f32.mrf.mxu0
    %287 = vdwg.mxu0
    %v288 = vld [vmem:[#allocation2] sm:$0xf]
    %v289 = vld [vmem:[#allocation2 + $0x4] sm:$0xf]
    %v290 = vld [vmem:[#allocation2 + $0x8] sm:$0xf]
    %v291 = vld [vmem:[#allocation2 + $0xc] sm:$0xf]
    %v292 = vld [vmem:[#allocation2 + $0x10] sm:$0xf]
    %v293 = vld [vmem:[#allocation2 + $0x14] sm:$0xf]
    %v294 = vld [vmem:[#allocation2 + $0x18] sm:$0xf]
    %v295 = vld [vmem:[#allocation2 + $0x1c] sm:$0xf]
    %v296 = vld [vmem:[#allocation2 + $0x20] sm:$0xf]
    %v297 = vld [vmem:[#allocation2 + $0x24] sm:$0xf]
    %v298 = vld [vmem:[#allocation2 + $0x28] sm:$0xf]
    %v299 = vld [vmem:[#allocation2 + $0x2c] sm:$0xf]
    %v300 = vld [vmem:[#allocation2 + $0x30] sm:$0xf]
    %v301 = vld [vmem:[#allocation2 + $0x34] sm:$0xf]
    %v302 = vld [vmem:[#allocation2 + $0x38] sm:$0xf]
    %v303 = vld [vmem:[#allocation2 + $0x3c] sm:$0xf]
    %v320 = vunpack.c.l.b16 %v288
    %v321 = vunpack.c.l.b16 %v289
    %v322 = vunpack.c.l.b16 %v290
    %v323 = vunpack.c.l.b16 %v291
    %v324 = vunpack.c.l.b16 %v292
    %v325 = vunpack.c.l.b16 %v293
    %v326 = vunpack.c.l.b16 %v294
    %v327 = vunpack.c.l.b16 %v295
    %v328 = vunpack.c.l.b16 %v296
    %v329 = vunpack.c.l.b16 %v297
    %v330 = vunpack.c.l.b16 %v298
    %v331 = vunpack.c.l.b16 %v299
    %v332 = vunpack.c.l.b16 %v300
    %v333 = vunpack.c.l.b16 %v301
    %v334 = vunpack.c.l.b16 %v302
    %v335 = vunpack.c.l.b16 %v303
    %v336 = vpack.c.b16 %v321, %v320
    %v337 = vpack.c.b16 %v323, %v322
    %v338 = vpack.c.b16 %v325, %v324
    %v339 = vpack.c.b16 %v327, %v326
    %v340 = vpack.c.b16 %v329, %v328
    %v341 = vpack.c.b16 %v331, %v330
    %v342 = vpack.c.b16 %v333, %v332
    %v343 = vpack.c.b16 %v335, %v334
    %352 = vmatprep.subr.bf16.mxu0 0
    %353 = vmatpush1.bf16.msra.mxu0 %v343
    %354 = vmatprep.subr.bf16.mxu0 0
    %355 = vmatpush1.bf16.msra.mxu0 %v342
    %356 = vmatprep.subr.bf16.mxu0 0
    %357 = vmatpush1.bf16.msra.mxu0 %v341
    %358 = vmatprep.subr.bf16.mxu0 0
    %359 = vmatpush1.bf16.msra.mxu0 %v340
    %360 = vmatprep.subr.bf16.mxu0 0
    %361 = vmatpush1.bf16.msra.mxu0 %v339
    %362 = vmatprep.subr.bf16.mxu0 0
    %363 = vmatpush1.bf16.msra.mxu0 %v338
    %364 = vmatprep.subr.bf16.mxu0 0
    %365 = vmatpush1.bf16.msra.mxu0 %v337
    %366 = vmatprep.subr.bf16.mxu0 0
    %367 = vmatpush1.bf16.msra.mxu0 %v336
    %368 = vmatprep.subr.bf16.mxu0 0
    %369 = vmatpush2.bf16.msra.mxu0 0
    %370 = vmatprep.subr.bf16.mxu0 0
    %371 = vmatpush2.bf16.msra.mxu0 0
    %372 = vmatprep.subr.bf16.mxu0 0
    %373 = vmatpush2.bf16.msra.mxu0 0
    %374 = vmatprep.subr.bf16.mxu0 0
    %375 = vmatpush2.bf16.msra.mxu0 0
    %376 = vmatprep.subr.bf16.mxu0 0
    %377 = vmatpush2.bf16.msra.mxu0 0
    %378 = vmatprep.subr.bf16.mxu0 0
    %379 = vmatpush2.bf16.msra.mxu0 0
    %380 = vmatprep.subr.bf16.mxu0 0
    %381 = vmatpush2.bf16.msra.mxu0 0
    %382 = vmatprep.subr.bf16.mxu0 0
    %383 = vmatpush2.bf16.msra.mxu0 0
    %384 = vmatprep.mubr.bf16.mxu0 0
    %385 = vmatmul.mubr.bf16.gmra.mxu0 0
    %v386 = vpop.f32.mrf.mxu0
    %v387 = vadd.f32 0.0, %v386
    %v388 = vpop.f32.mrf.mxu0
    %v389 = vpop.f32.mrf.mxu0
    %v390 = vpop.f32.mrf.mxu0
    %391 = vdwg.mxu0
    %v392 = vadd.f32 %v258, %v387
    %v393 = vtanh.pop %v392
    %v394 = vpack.c.bf16 %v393, %v393
    %395 = vmatprep.subr.bf16.mxu0 0
    %396 = vmatpush1.bf16.msra.mxu0 %v343
    %397 = vmatprep.subr.bf16.mxu0 0
    %398 = vmatpush1.bf16.msra.mxu0 %v342
    %399 = vmatprep.subr.bf16.mxu0 0
    %400 = vmatpush1.bf16.msra.mxu0 %v341
    %401 = vmatprep.subr.bf16.mxu0 0
    %402 = vmatpush1.bf16.msra.mxu0 %v340
    %403 = vmatprep.subr.bf16.mxu0 0
    %404 = vmatpush1.bf16.msra.mxu0 %v339
    %405 = vmatprep.subr.bf16.mxu0 0
    %406 = vmatpush1.bf16.msra.mxu0 %v338
    %407 = vmatprep.subr.bf16.mxu0 0
    %408 = vmatpush1.bf16.msra.mxu0 %v337
    %409 = vmatprep.subr.bf16.mxu0 0
    %410 = vmatpush1.bf16.msra.mxu0 %v336
    %411 = vmatprep.subr.bf16.mxu0 0
    %412 = vmatpush2.bf16.msra.mxu0 0
    %413 = vmatprep.subr.bf16.mxu0 0
    %414 = vmatpush2.bf16.msra.mxu0 0
    %415 = vmatprep.subr.bf16.mxu0 0
    %416 = vmatpush2.bf16.msra.mxu0 0
    %417 = vmatprep.subr.bf16.mxu0 0
    %418 = vmatpush2.bf16.msra.mxu0 0
    %419 = vmatprep.subr.bf16.mxu0 0
    %420 = vmatpush2.bf16.msra.mxu0 0
    %421 = vmatprep.subr.bf16.mxu0 0
    %422 = vmatpush2.bf16.msra.mxu0 0
    %423 = vmatprep.subr.bf16.mxu0 0
    %424 = vmatpush2.bf16.msra.mxu0 0
    %425 = vmatprep.subr.bf16.mxu0 0
    %426 = vmatpush2.bf16.msra.mxu0 0
    %427 = vmatprep.mubr.bf16.mxu0 0
    %428 = vmatmul.mubr.bf16.gmra.mxu0 %v394
    %v429 = vpop.f32.mrf.mxu0
    %v430 = vadd.f32 0.0, %v429
    %v431 = vpop.f32.mrf.mxu0
    %v432 = vpop.f32.mrf.mxu0
    %v433 = vpop.f32.mrf.mxu0
    %434 = vdwg.mxu0
    %v435 = vadd.f32 %v261, %v430
    %v436 = vtanh.pop %v435
    %v437 = vpack.c.bf16 %v436, %v436
    %438 = vmatprep.subr.bf16.mxu0 0
    %439 = vmatpush1.bf16.msra.mxu0 %v343
    %440 = vmatprep.subr.bf16.mxu0 0
    %441 = vmatpush1.bf16.msra.mxu0 %v342
    %442 = vmatprep.subr.bf16.mxu0 0
    %443 = vmatpush1.bf16.msra.mxu0 %v341
    %444 = vmatprep.subr.bf16.mxu0 0
    %445 = vmatpush1.bf16.msra.mxu0 %v340
    %446 = vmatprep.subr.bf16.mxu0 0
    %447 = vmatpush1.bf16.msra.mxu0 %v339
    %448 = vmatprep.subr.bf16.mxu0 0
    %449 = vmatpush1.bf16.msra.mxu0 %v338
    %450 = vmatprep.subr.bf16.mxu0 0
    %451 = vmatpush1.bf16.msra.mxu0 %v337
    %452 = vmatprep.subr.bf16.mxu0 0
    %453 = vmatpush1.bf16.msra.mxu0 %v336
    %454 = vmatprep.subr.bf16.mxu0 0
    %455 = vmatpush2.bf16.msra.mxu0 0
    %456 = vmatprep.subr.bf16.mxu0 0
    %457 = vmatpush2.bf16.msra.mxu0 0
    %458 = vmatprep.subr.bf16.mxu0 0
    %459 = vmatpush2.bf16.msra.mxu0 0
    %460 = vmatprep.subr.bf16.mxu0 0
    %461 = vmatpush2.bf16.msra.mxu0 0
    %462 = vmatprep.subr.bf16.mxu0 0
    %463 = vmatpush2.bf16.msra.mxu0 0
    %464 = vmatprep.subr.bf16.mxu0 0
    %465 = vmatpush2.bf16.msra.mxu0 0
    %466 = vmatprep.subr.bf16.mxu0 0
    %467 = vmatpush2.bf16.msra.mxu0 0
    %468 = vmatprep.subr.bf16.mxu0 0
    %469 = vmatpush2.bf16.msra.mxu0 0
    %470 = vmatprep.mubr.bf16.mxu0 0
    %471 = vmatmul.mubr.bf16.gmra.mxu0 %v437
    %v472 = vpop.f32.mrf.mxu0
    %v473 = vadd.f32 0.0, %v472
    %v474 = vpop.f32.mrf.mxu0
    %v475 = vpop.f32.mrf.mxu0
    %v476 = vpop.f32.mrf.mxu0
    %477 = vdwg.mxu0
    %v478 = vadd.f32 %v266, %v473
    %v479 = vtanh.pop %v478
    %v480 = vpack.c.bf16 %v479, %v479
    %481 = vmatprep.subr.bf16.mxu0 0
    %482 = vmatpush1.bf16.msra.mxu0 %v343
    %483 = vmatprep.subr.bf16.mxu0 0
    %484 = vmatpush1.bf16.msra.mxu0 %v342
    %485 = vmatprep.subr.bf16.mxu0 0
    %486 = vmatpush1.bf16.msra.mxu0 %v341
    %487 = vmatprep.subr.bf16.mxu0 0
    %488 = vmatpush1.bf16.msra.mxu0 %v340
    %489 = vmatprep.subr.bf16.mxu0 0
    %490 = vmatpush1.bf16.msra.mxu0 %v339
    %491 = vmatprep.subr.bf16.mxu0 0
    %492 = vmatpush1.bf16.msra.mxu0 %v338
    %493 = vmatprep.subr.bf16.mxu0 0
    %494 = vmatpush1.bf16.msra.mxu0 %v337
    %495 = vmatprep.subr.bf16.mxu0 0
    %496 = vmatpush1.bf16.msra.mxu0 %v336
    %497 = vmatprep.subr.bf16.mxu0 0
    %498 = vmatpush2.bf16.msra.mxu0 0
    %499 = vmatprep.subr.bf16.mxu0 0
    %500 = vmatpush2.bf16.msra.mxu0 0
    %501 = vmatprep.subr.bf16.mxu0 0
    %502 = vmatpush2.bf16.msra.mxu0 0
    %503 = vmatprep.subr.bf16.mxu0 0
    %504 = vmatpush2.bf16.msra.mxu0 0
    %505 = vmatprep.subr.bf16.mxu0 0
    %506 = vmatpush2.bf16.msra.mxu0 0
    %507 = vmatprep.subr.bf16.mxu0 0
    %508 = vmatpush2.bf16.msra.mxu0 0
    %509 = vmatprep.subr.bf16.mxu0 0
    %510 = vmatpush2.bf16.msra.mxu0 0
    %511 = vmatprep.subr.bf16.mxu0 0
    %512 = vmatpush2.bf16.msra.mxu0 0
    %513 = vmatprep.mubr.bf16.mxu0 0
    %514 = vmatmul.mubr.bf16.gmra.mxu0 %v480
    %v515 = vpop.f32.mrf.mxu0
    %v516 = vadd.f32 0.0, %v515
    %v517 = vpop.f32.mrf.mxu0
    %v518 = vpop.f32.mrf.mxu0
    %v519 = vpop.f32.mrf.mxu0
    %520 = vdwg.mxu0
    %v521 = vadd.f32 %v269, %v516
    %v522 = vtanh.pop %v521
    %v523 = vpack.c.bf16 %v522, %v522
    %524 = vmatprep.subr.bf16.mxu0 0
    %525 = vmatpush1.bf16.msra.mxu0 %v343
    %526 = vmatprep.subr.bf16.mxu0 0
    %527 = vmatpush1.bf16.msra.mxu0 %v342
    %528 = vmatprep.subr.bf16.mxu0 0
    %529 = vmatpush1.bf16.msra.mxu0 %v341
    %530 = vmatprep.subr.bf16.mxu0 0
    %531 = vmatpush1.bf16.msra.mxu0 %v340
    %532 = vmatprep.subr.bf16.mxu0 0
    %533 = vmatpush1.bf16.msra.mxu0 %v339
    %534 = vmatprep.subr.bf16.mxu0 0
    %535 = vmatpush1.bf16.msra.mxu0 %v338
    %536 = vmatprep.subr.bf16.mxu0 0
    %537 = vmatpush1.bf16.msra.mxu0 %v337
    %538 = vmatprep.subr.bf16.mxu0 0
    %539 = vmatpush1.bf16.msra.mxu0 %v336
    %540 = vmatprep.subr.bf16.mxu0 0
    %541 = vmatpush2.bf16.msra.mxu0 0
    %542 = vmatprep.subr.bf16.mxu0 0
    %543 = vmatpush2.bf16.msra.mxu0 0
    %544 = vmatprep.subr.bf16.mxu0 0
    %545 = vmatpush2.bf16.msra.mxu0 0
    %546 = vmatprep.subr.bf16.mxu0 0
    %547 = vmatpush2.bf16.msra.mxu0 0
    %548 = vmatprep.subr.bf16.mxu0 0
    %549 = vmatpush2.bf16.msra.mxu0 0
    %550 = vmatprep.subr.bf16.mxu0 0
    %551 = vmatpush2.bf16.msra.mxu0 0
    %552 = vmatprep.subr.bf16.mxu0 0
    %553 = vmatpush2.bf16.msra.mxu0 0
    %554 = vmatprep.subr.bf16.mxu0 0
    %555 = vmatpush2.bf16.msra.mxu0 0
    %556 = vmatprep.mubr.bf16.mxu0 0
    %557 = vmatmul.mubr.bf16.gmra.mxu0 %v523
    %v558 = vpop.f32.mrf.mxu0
    %v559 = vadd.f32 0.0, %v558
    %v560 = vpop.f32.mrf.mxu0
    %v561 = vpop.f32.mrf.mxu0
    %v562 = vpop.f32.mrf.mxu0
    %563 = vdwg.mxu0
    %v564 = vadd.f32 %v274, %v559
    %v565 = vtanh.pop %v564
    %v566 = vpack.c.bf16 %v565, %v565
    %567 = vmatprep.subr.bf16.mxu0 0
    %568 = vmatpush1.bf16.msra.mxu0 %v343
    %569 = vmatprep.subr.bf16.mxu0 0
    %570 = vmatpush1.bf16.msra.mxu0 %v342
    %571 = vmatprep.subr.bf16.mxu0 0
    %572 = vmatpush1.bf16.msra.mxu0 %v341
    %573 = vmatprep.subr.bf16.mxu0 0
    %574 = vmatpush1.bf16.msra.mxu0 %v340
    %575 = vmatprep.subr.bf16.mxu0 0
    %576 = vmatpush1.bf16.msra.mxu0 %v339
    %577 = vmatprep.subr.bf16.mxu0 0
    %578 = vmatpush1.bf16.msra.mxu0 %v338
    %579 = vmatprep.subr.bf16.mxu0 0
    %580 = vmatpush1.bf16.msra.mxu0 %v337
    %581 = vmatprep.subr.bf16.mxu0 0
    %582 = vmatpush1.bf16.msra.mxu0 %v336
    %583 = vmatprep.subr.bf16.mxu0 0
    %584 = vmatpush2.bf16.msra.mxu0 0
    %585 = vmatprep.subr.bf16.mxu0 0
    %586 = vmatpush2.bf16.msra.mxu0 0
    %587 = vmatprep.subr.bf16.mxu0 0
    %588 = vmatpush2.bf16.msra.mxu0 0
    %589 = vmatprep.subr.bf16.mxu0 0
    %590 = vmatpush2.bf16.msra.mxu0 0
    %591 = vmatprep.subr.bf16.mxu0 0
    %592 = vmatpush2.bf16.msra.mxu0 0
    %593 = vmatprep.subr.bf16.mxu0 0
    %594 = vmatpush2.bf16.msra.mxu0 0
    %595 = vmatprep.subr.bf16.mxu0 0
    %596 = vmatpush2.bf16.msra.mxu0 0
    %597 = vmatprep.subr.bf16.mxu0 0
    %598 = vmatpush2.bf16.msra.mxu0 0
    %599 = vmatprep.mubr.bf16.mxu0 0
    %600 = vmatmul.mubr.bf16.gmra.mxu0 %v566
    %v601 = vpop.f32.mrf.mxu0
    %v602 = vadd.f32 0.0, %v601
    %v603 = vpop.f32.mrf.mxu0
    %v604 = vpop.f32.mrf.mxu0
    %v605 = vpop.f32.mrf.mxu0
    %606 = vdwg.mxu0
    %v607 = vadd.f32 %v277, %v602
    %v608 = vtanh.pop %v607
    %v609 = vpack.c.bf16 %v608, %v608
    %610 = vmatprep.subr.bf16.mxu0 0
    %611 = vmatpush1.bf16.msra.mxu0 %v343
    %612 = vmatprep.subr.bf16.mxu0 0
    %613 = vmatpush1.bf16.msra.mxu0 %v342
    %614 = vmatprep.subr.bf16.mxu0 0
    %615 = vmatpush1.bf16.msra.mxu0 %v341
    %616 = vmatprep.subr.bf16.mxu0 0
    %617 = vmatpush1.bf16.msra.mxu0 %v340
    %618 = vmatprep.subr.bf16.mxu0 0
    %619 = vmatpush1.bf16.msra.mxu0 %v339
    %620 = vmatprep.subr.bf16.mxu0 0
    %621 = vmatpush1.bf16.msra.mxu0 %v338
    %622 = vmatprep.subr.bf16.mxu0 0
    %623 = vmatpush1.bf16.msra.mxu0 %v337
    %624 = vmatprep.subr.bf16.mxu0 0
    %625 = vmatpush1.bf16.msra.mxu0 %v336
    %626 = vmatprep.subr.bf16.mxu0 0
    %627 = vmatpush2.bf16.msra.mxu0 0
    %628 = vmatprep.subr.bf16.mxu0 0
    %629 = vmatpush2.bf16.msra.mxu0 0
    %630 = vmatprep.subr.bf16.mxu0 0
    %631 = vmatpush2.bf16.msra.mxu0 0
    %632 = vmatprep.subr.bf16.mxu0 0
    %633 = vmatpush2.bf16.msra.mxu0 0
    %634 = vmatprep.subr.bf16.mxu0 0
    %635 = vmatpush2.bf16.msra.mxu0 0
    %636 = vmatprep.subr.bf16.mxu0 0
    %637 = vmatpush2.bf16.msra.mxu0 0
    %638 = vmatprep.subr.bf16.mxu0 0
    %639 = vmatpush2.bf16.msra.mxu0 0
    %640 = vmatprep.subr.bf16.mxu0 0
    %641 = vmatpush2.bf16.msra.mxu0 0
    %642 = vmatprep.mubr.bf16.mxu0 0
    %643 = vmatmul.mubr.bf16.gmra.mxu0 %v609
    %v644 = vpop.f32.mrf.mxu0
    %v645 = vadd.f32 0.0, %v644
    %v646 = vpop.f32.mrf.mxu0
    %v647 = vpop.f32.mrf.mxu0
    %v648 = vpop.f32.mrf.mxu0
    %649 = vdwg.mxu0
    %v650 = vadd.f32 %v282, %v645
    %v651 = vtanh.pop %v650
    %v652 = vpack.c.bf16 %v651, %v651
    %653 = vmatprep.subr.bf16.mxu0 0
    %654 = vmatpush1.bf16.msra.mxu0 %v343
    %655 = vmatprep.subr.bf16.mxu0 0
    %656 = vmatpush1.bf16.msra.mxu0 %v342
    %657 = vmatprep.subr.bf16.mxu0 0
    %658 = vmatpush1.bf16.msra.mxu0 %v341
    %659 = vmatprep.subr.bf16.mxu0 0
    %660 = vmatpush1.bf16.msra.mxu0 %v340
    %661 = vmatprep.subr.bf16.mxu0 0
    %662 = vmatpush1.bf16.msra.mxu0 %v339
    %663 = vmatprep.subr.bf16.mxu0 0
    %664 = vmatpush1.bf16.msra.mxu0 %v338
    %665 = vmatprep.subr.bf16.mxu0 0
    %666 = vmatpush1.bf16.msra.mxu0 %v337
    %667 = vmatprep.subr.bf16.mxu0 0
    %668 = vmatpush1.bf16.msra.mxu0 %v336
    %669 = vmatprep.subr.bf16.mxu0 0
    %670 = vmatpush2.bf16.msra.mxu0 0
    %671 = vmatprep.subr.bf16.mxu0 0
    %672 = vmatpush2.bf16.msra.mxu0 0
    %673 = vmatprep.subr.bf16.mxu0 0
    %674 = vmatpush2.bf16.msra.mxu0 0
    %675 = vmatprep.subr.bf16.mxu0 0
    %676 = vmatpush2.bf16.msra.mxu0 0
    %677 = vmatprep.subr.bf16.mxu0 0
    %678 = vmatpush2.bf16.msra.mxu0 0
    %679 = vmatprep.subr.bf16.mxu0 0
    %680 = vmatpush2.bf16.msra.mxu0 0
    %681 = vmatprep.subr.bf16.mxu0 0
    %682 = vmatpush2.bf16.msra.mxu0 0
    %683 = vmatprep.subr.bf16.mxu0 0
    %684 = vmatpush2.bf16.msra.mxu0 0
    %685 = vmatprep.mubr.bf16.mxu0 0
    %686 = vmatmul.mubr.bf16.gmra.mxu0 %v652
    %v687 = vpop.f32.mrf.mxu0
    %v688 = vadd.f32 0.0, %v687
    %v689 = vpop.f32.mrf.mxu0
    %v690 = vpop.f32.mrf.mxu0
    %v691 = vpop.f32.mrf.mxu0
    %692 = vdwg.mxu0
    %v693 = vadd.f32 %v285, %v688
    %v694 = vtanh.pop %v693
    %695 = vst [vmem:[%s10] sm:$0xff] %v694
    %v696 = vpack.c.bf16 %v436, %v393
    %v697 = vpack.c.bf16 %v522, %v479
    %v698 = vpack.c.bf16 %v608, %v565
    %v699 = vpack.c.bf16 %v694, %v651
    %v700 = vld [vmem:[#allocation4] sm:$0xf]
    %v701 = vld [vmem:[#allocation4 + $0x4] sm:$0xf]
    %v702 = vld [vmem:[#allocation4 + $0x8] sm:$0xf]
    %v703 = vld [vmem:[#allocation4 + $0xc] sm:$0xf]
    %v704 = vld [vmem:[#allocation4 + $0x10] sm:$0xf]
    %v705 = vld [vmem:[#allocation4 + $0x14] sm:$0xf]
    %v706 = vld [vmem:[#allocation4 + $0x18] sm:$0xf]
    %v707 = vld [vmem:[#allocation4 + $0x1c] sm:$0xf]
    %v708 = vld [vmem:[#allocation4 + $0x20] sm:$0xf]
    %v709 = vld [vmem:[#allocation4 + $0x24] sm:$0xf]
    %v710 = vld [vmem:[#allocation4 + $0x28] sm:$0xf]
    %v711 = vld [vmem:[#allocation4 + $0x2c] sm:$0xf]
    %v712 = vld [vmem:[#allocation4 + $0x30] sm:$0xf]
    %v713 = vld [vmem:[#allocation4 + $0x34] sm:$0xf]
    %v714 = vld [vmem:[#allocation4 + $0x38] sm:$0xf]
    %v715 = vld [vmem:[#allocation4 + $0x3c] sm:$0xf]
    %v716 = vld [vmem:[%s6] sm:$0x1]
    %v718 = vlaneseq
    %v719 = vshrl.u32 %v718, 7
    %v720 = vsub.s32 0, %v719
    %v721 = vrot.slane %v716, %v720
    %v739 = vunpack.c.l.b16 %v700
    %v740 = vunpack.c.l.b16 %v701
    %v741 = vunpack.c.l.b16 %v702
    %v742 = vunpack.c.l.b16 %v703
    %v743 = vunpack.c.l.b16 %v704
    %v744 = vunpack.c.l.b16 %v705
    %v745 = vunpack.c.l.b16 %v706
    %v746 = vunpack.c.l.b16 %v707
    %v747 = vunpack.c.l.b16 %v708
    %v748 = vunpack.c.l.b16 %v709
    %v749 = vunpack.c.l.b16 %v710
    %v750 = vunpack.c.l.b16 %v711
    %v751 = vunpack.c.l.b16 %v712
    %v752 = vunpack.c.l.b16 %v713
    %v753 = vunpack.c.l.b16 %v714
    %v754 = vunpack.c.l.b16 %v715
    %v755 = vpack.c.b16 %v740, %v739
    %v756 = vpack.c.b16 %v742, %v741
    %v757 = vpack.c.b16 %v744, %v743
    %v758 = vpack.c.b16 %v746, %v745
    %v759 = vpack.c.b16 %v748, %v747
    %v760 = vpack.c.b16 %v750, %v749
    %v761 = vpack.c.b16 %v752, %v751
    %v762 = vpack.c.b16 %v754, %v753
    %771 = vmatprep.subr.bf16.mxu0 0
    %772 = vmatpush1.bf16.msra.mxu0 %v762
    %773 = vmatprep.subr.bf16.mxu0 0
    %774 = vmatpush1.bf16.msra.mxu0 %v761
    %775 = vmatprep.subr.bf16.mxu0 0
    %776 = vmatpush1.bf16.msra.mxu0 %v760
    %777 = vmatprep.subr.bf16.mxu0 0
    %778 = vmatpush1.bf16.msra.mxu0 %v759
    %779 = vmatprep.subr.bf16.mxu0 0
    %780 = vmatpush1.bf16.msra.mxu0 %v758
    %781 = vmatprep.subr.bf16.mxu0 0
    %782 = vmatpush1.bf16.msra.mxu0 %v757
    %783 = vmatprep.subr.bf16.mxu0 0
    %784 = vmatpush1.bf16.msra.mxu0 %v756
    %785 = vmatprep.subr.bf16.mxu0 0
    %786 = vmatpush1.bf16.msra.mxu0 %v755
    %787 = vmatprep.subr.bf16.mxu0 0
    %788 = vmatpush2.bf16.msra.mxu0 0
    %789 = vmatprep.subr.bf16.mxu0 0
    %790 = vmatpush2.bf16.msra.mxu0 0
    %791 = vmatprep.subr.bf16.mxu0 0
    %792 = vmatpush2.bf16.msra.mxu0 0
    %793 = vmatprep.subr.bf16.mxu0 0
    %794 = vmatpush2.bf16.msra.mxu0 0
    %795 = vmatprep.subr.bf16.mxu0 0
    %796 = vmatpush2.bf16.msra.mxu0 0
    %797 = vmatprep.subr.bf16.mxu0 0
    %798 = vmatpush2.bf16.msra.mxu0 0
    %799 = vmatprep.subr.bf16.mxu0 0
    %800 = vmatpush2.bf16.msra.mxu0 0
    %801 = vmatprep.subr.bf16.mxu0 0
    %802 = vmatpush2.bf16.msra.mxu0 0
    %803 = vmatprep.mubr.bf16.mxu0 0
    %804 = vmatmul.mubr.bf16.gmra.mxu0 %v696
    %v805 = vpop.f32.mrf.mxu0
    %v806 = vadd.f32 %v721, %v805
    %v807 = vpop.f32.mrf.mxu0
    %v808 = vpop.f32.mrf.mxu0
    %v809 = vadd.f32 %v721, %v808
    %v810 = vpop.f32.mrf.mxu0
    %811 = vmatprep.mubr.bf16.mxu0 0
    %812 = vmatmul.mubr.bf16.gmra.mxu0 %v697
    %v813 = vpop.f32.mrf.mxu0
    %v814 = vadd.f32 %v721, %v813
    %v815 = vpop.f32.mrf.mxu0
    %v816 = vpop.f32.mrf.mxu0
    %v817 = vadd.f32 %v721, %v816
    %v818 = vpop.f32.mrf.mxu0
    %819 = vmatprep.mubr.bf16.mxu0 0
    %820 = vmatmul.mubr.bf16.gmra.mxu0 %v698
    %v821 = vpop.f32.mrf.mxu0
    %v822 = vadd.f32 %v721, %v821
    %v823 = vpop.f32.mrf.mxu0
    %v824 = vpop.f32.mrf.mxu0
    %v825 = vadd.f32 %v721, %v824
    %v826 = vpop.f32.mrf.mxu0
    %827 = vmatprep.mubr.bf16.mxu0 0
    %828 = vmatmul.mubr.bf16.gmra.mxu0 %v699
    %v829 = vpop.f32.mrf.mxu0
    %v830 = vadd.f32 %v721, %v829
    %v831 = vpop.f32.mrf.mxu0
    %v832 = vpop.f32.mrf.mxu0
    %v833 = vadd.f32 %v721, %v832
    %v834 = vpop.f32.mrf.mxu0
    %835 = vdwg.mxu0
    %v836 = vld [vmem:[#allocation6] sm:$0xf]
    %v837 = vld [vmem:[#allocation6 + $0x4] sm:$0xf]
    %v838 = vld [vmem:[#allocation6 + $0x8] sm:$0xf]
    %v839 = vld [vmem:[#allocation6 + $0xc] sm:$0xf]
    %v840 = vld [vmem:[#allocation6 + $0x10] sm:$0xf]
    %v841 = vld [vmem:[#allocation6 + $0x14] sm:$0xf]
    %v842 = vld [vmem:[#allocation6 + $0x18] sm:$0xf]
    %v843 = vld [vmem:[#allocation6 + $0x1c] sm:$0xf]
    %v844 = vld [vmem:[#allocation6 + $0x20] sm:$0xf]
    %v845 = vld [vmem:[#allocation6 + $0x24] sm:$0xf]
    %v846 = vld [vmem:[#allocation6 + $0x28] sm:$0xf]
    %v847 = vld [vmem:[#allocation6 + $0x2c] sm:$0xf]
    %v848 = vld [vmem:[#allocation6 + $0x30] sm:$0xf]
    %v849 = vld [vmem:[#allocation6 + $0x34] sm:$0xf]
    %v850 = vld [vmem:[#allocation6 + $0x38] sm:$0xf]
    %v851 = vld [vmem:[#allocation6 + $0x3c] sm:$0xf]
    %v868 = vunpack.c.l.b16 %v836
    %v869 = vunpack.c.l.b16 %v837
    %v870 = vunpack.c.l.b16 %v838
    %v871 = vunpack.c.l.b16 %v839
    %v872 = vunpack.c.l.b16 %v840
    %v873 = vunpack.c.l.b16 %v841
    %v874 = vunpack.c.l.b16 %v842
    %v875 = vunpack.c.l.b16 %v843
    %v876 = vunpack.c.l.b16 %v844
    %v877 = vunpack.c.l.b16 %v845
    %v878 = vunpack.c.l.b16 %v846
    %v879 = vunpack.c.l.b16 %v847
    %v880 = vunpack.c.l.b16 %v848
    %v881 = vunpack.c.l.b16 %v849
    %v882 = vunpack.c.l.b16 %v850
    %v883 = vunpack.c.l.b16 %v851
    %v884 = vpack.c.b16 %v869, %v868
    %v885 = vpack.c.b16 %v871, %v870
    %v886 = vpack.c.b16 %v873, %v872
    %v887 = vpack.c.b16 %v875, %v874
    %v888 = vpack.c.b16 %v877, %v876
    %v889 = vpack.c.b16 %v879, %v878
    %v890 = vpack.c.b16 %v881, %v880
    %v891 = vpack.c.b16 %v883, %v882
    %900 = vmatprep.subr.bf16.mxu0 0
    %901 = vmatpush1.bf16.msra.mxu0 %v891
    %902 = vmatprep.subr.bf16.mxu0 0
    %903 = vmatpush1.bf16.msra.mxu0 %v890
    %904 = vmatprep.subr.bf16.mxu0 0
    %905 = vmatpush1.bf16.msra.mxu0 %v889
    %906 = vmatprep.subr.bf16.mxu0 0
    %907 = vmatpush1.bf16.msra.mxu0 %v888
    %908 = vmatprep.subr.bf16.mxu0 0
    %909 = vmatpush1.bf16.msra.mxu0 %v887
    %910 = vmatprep.subr.bf16.mxu0 0
    %911 = vmatpush1.bf16.msra.mxu0 %v886
    %912 = vmatprep.subr.bf16.mxu0 0
    %913 = vmatpush1.bf16.msra.mxu0 %v885
    %914 = vmatprep.subr.bf16.mxu0 0
    %915 = vmatpush1.bf16.msra.mxu0 %v884
    %916 = vmatprep.subr.bf16.mxu0 0
    %917 = vmatpush2.bf16.msra.mxu0 0
    %918 = vmatprep.subr.bf16.mxu0 0
    %919 = vmatpush2.bf16.msra.mxu0 0
    %920 = vmatprep.subr.bf16.mxu0 0
    %921 = vmatpush2.bf16.msra.mxu0 0
    %922 = vmatprep.subr.bf16.mxu0 0
    %923 = vmatpush2.bf16.msra.mxu0 0
    %924 = vmatprep.subr.bf16.mxu0 0
    %925 = vmatpush2.bf16.msra.mxu0 0
    %926 = vmatprep.subr.bf16.mxu0 0
    %927 = vmatpush2.bf16.msra.mxu0 0
    %928 = vmatprep.subr.bf16.mxu0 0
    %929 = vmatpush2.bf16.msra.mxu0 0
    %930 = vmatprep.subr.bf16.mxu0 0
    %931 = vmatpush2.bf16.msra.mxu0 0
    %932 = vmatprep.mubr.bf16.mxu0 0
    %933 = vmatmul.mubr.bf16.gmra.mxu0 0
    %v934 = vpop.f32.mrf.mxu0
    %v935 = vadd.f32 0.0, %v934
    %v936 = vpop.f32.mrf.mxu0
    %v937 = vpop.f32.mrf.mxu0
    %v938 = vpop.f32.mrf.mxu0
    %939 = vdwg.mxu0
    %v940 = vadd.f32 %v806, %v935
    %v941 = vtanh.pop %v940
    %v942 = vpack.c.bf16 %v941, %v941
    %943 = vmatprep.subr.bf16.mxu0 0
    %944 = vmatpush1.bf16.msra.mxu0 %v891
    %945 = vmatprep.subr.bf16.mxu0 0
    %946 = vmatpush1.bf16.msra.mxu0 %v890
    %947 = vmatprep.subr.bf16.mxu0 0
    %948 = vmatpush1.bf16.msra.mxu0 %v889
    %949 = vmatprep.subr.bf16.mxu0 0
    %950 = vmatpush1.bf16.msra.mxu0 %v888
    %951 = vmatprep.subr.bf16.mxu0 0
    %952 = vmatpush1.bf16.msra.mxu0 %v887
    %953 = vmatprep.subr.bf16.mxu0 0
    %954 = vmatpush1.bf16.msra.mxu0 %v886
    %955 = vmatprep.subr.bf16.mxu0 0
    %956 = vmatpush1.bf16.msra.mxu0 %v885
    %957 = vmatprep.subr.bf16.mxu0 0
    %958 = vmatpush1.bf16.msra.mxu0 %v884
    %959 = vmatprep.subr.bf16.mxu0 0
    %960 = vmatpush2.bf16.msra.mxu0 0
    %961 = vmatprep.subr.bf16.mxu0 0
    %962 = vmatpush2.bf16.msra.mxu0 0
    %963 = vmatprep.subr.bf16.mxu0 0
    %964 = vmatpush2.bf16.msra.mxu0 0
    %965 = vmatprep.subr.bf16.mxu0 0
    %966 = vmatpush2.bf16.msra.mxu0 0
    %967 = vmatprep.subr.bf16.mxu0 0
    %968 = vmatpush2.bf16.msra.mxu0 0
    %969 = vmatprep.subr.bf16.mxu0 0
    %970 = vmatpush2.bf16.msra.mxu0 0
    %971 = vmatprep.subr.bf16.mxu0 0
    %972 = vmatpush2.bf16.msra.mxu0 0
    %973 = vmatprep.subr.bf16.mxu0 0
    %974 = vmatpush2.bf16.msra.mxu0 0
    %975 = vmatprep.mubr.bf16.mxu0 0
    %976 = vmatmul.mubr.bf16.gmra.mxu0 %v942
    %v977 = vpop.f32.mrf.mxu0
    %v978 = vadd.f32 0.0, %v977
    %v979 = vpop.f32.mrf.mxu0
    %v980 = vpop.f32.mrf.mxu0
    %v981 = vpop.f32.mrf.mxu0
    %982 = vdwg.mxu0
    %v983 = vadd.f32 %v809, %v978
    %v984 = vtanh.pop %v983
    %v985 = vpack.c.bf16 %v984, %v984
    %986 = vmatprep.subr.bf16.mxu0 0
    %987 = vmatpush1.bf16.msra.mxu0 %v891
    %988 = vmatprep.subr.bf16.mxu0 0
    %989 = vmatpush1.bf16.msra.mxu0 %v890
    %990 = vmatprep.subr.bf16.mxu0 0
    %991 = vmatpush1.bf16.msra.mxu0 %v889
    %992 = vmatprep.subr.bf16.mxu0 0
    %993 = vmatpush1.bf16.msra.mxu0 %v888
    %994 = vmatprep.subr.bf16.mxu0 0
    %995 = vmatpush1.bf16.msra.mxu0 %v887
    %996 = vmatprep.subr.bf16.mxu0 0
    %997 = vmatpush1.bf16.msra.mxu0 %v886
    %998 = vmatprep.subr.bf16.mxu0 0
    %999 = vmatpush1.bf16.msra.mxu0 %v885
    %1000 = vmatprep.subr.bf16.mxu0 0
    %1001 = vmatpush1.bf16.msra.mxu0 %v884
    %1002 = vmatprep.subr.bf16.mxu0 0
    %1003 = vmatpush2.bf16.msra.mxu0 0
    %1004 = vmatprep.subr.bf16.mxu0 0
    %1005 = vmatpush2.bf16.msra.mxu0 0
    %1006 = vmatprep.subr.bf16.mxu0 0
    %1007 = vmatpush2.bf16.msra.mxu0 0
    %1008 = vmatprep.subr.bf16.mxu0 0
    %1009 = vmatpush2.bf16.msra.mxu0 0
    %1010 = vmatprep.subr.bf16.mxu0 0
    %1011 = vmatpush2.bf16.msra.mxu0 0
    %1012 = vmatprep.subr.bf16.mxu0 0
    %1013 = vmatpush2.bf16.msra.mxu0 0
    %1014 = vmatprep.subr.bf16.mxu0 0
    %1015 = vmatpush2.bf16.msra.mxu0 0
    %1016 = vmatprep.subr.bf16.mxu0 0
    %1017 = vmatpush2.bf16.msra.mxu0 0
    %1018 = vmatprep.mubr.bf16.mxu0 0
    %1019 = vmatmul.mubr.bf16.gmra.mxu0 %v985
    %v1020 = vpop.f32.mrf.mxu0
    %v1021 = vadd.f32 0.0, %v1020
    %v1022 = vpop.f32.mrf.mxu0
    %v1023 = vpop.f32.mrf.mxu0
    %v1024 = vpop.f32.mrf.mxu0
    %1025 = vdwg.mxu0
    %v1026 = vadd.f32 %v814, %v1021
    %v1027 = vtanh.pop %v1026
    %v1028 = vpack.c.bf16 %v1027, %v1027
    %1029 = vmatprep.subr.bf16.mxu0 0
    %1030 = vmatpush1.bf16.msra.mxu0 %v891
    %1031 = vmatprep.subr.bf16.mxu0 0
    %1032 = vmatpush1.bf16.msra.mxu0 %v890
    %1033 = vmatprep.subr.bf16.mxu0 0
    %1034 = vmatpush1.bf16.msra.mxu0 %v889
    %1035 = vmatprep.subr.bf16.mxu0 0
    %1036 = vmatpush1.bf16.msra.mxu0 %v888
    %1037 = vmatprep.subr.bf16.mxu0 0
    %1038 = vmatpush1.bf16.msra.mxu0 %v887
    %1039 = vmatprep.subr.bf16.mxu0 0
    %1040 = vmatpush1.bf16.msra.mxu0 %v886
    %1041 = vmatprep.subr.bf16.mxu0 0
    %1042 = vmatpush1.bf16.msra.mxu0 %v885
    %1043 = vmatprep.subr.bf16.mxu0 0
    %1044 = vmatpush1.bf16.msra.mxu0 %v884
    %1045 = vmatprep.subr.bf16.mxu0 0
    %1046 = vmatpush2.bf16.msra.mxu0 0
    %1047 = vmatprep.subr.bf16.mxu0 0
    %1048 = vmatpush2.bf16.msra.mxu0 0
    %1049 = vmatprep.subr.bf16.mxu0 0
    %1050 = vmatpush2.bf16.msra.mxu0 0
    %1051 = vmatprep.subr.bf16.mxu0 0
    %1052 = vmatpush2.bf16.msra.mxu0 0
    %1053 = vmatprep.subr.bf16.mxu0 0
    %1054 = vmatpush2.bf16.msra.mxu0 0
    %1055 = vmatprep.subr.bf16.mxu0 0
    %1056 = vmatpush2.bf16.msra.mxu0 0
    %1057 = vmatprep.subr.bf16.mxu0 0
    %1058 = vmatpush2.bf16.msra.mxu0 0
    %1059 = vmatprep.subr.bf16.mxu0 0
    %1060 = vmatpush2.bf16.msra.mxu0 0
    %1061 = vmatprep.mubr.bf16.mxu0 0
    %1062 = vmatmul.mubr.bf16.gmra.mxu0 %v1028
    %v1063 = vpop.f32.mrf.mxu0
    %v1064 = vadd.f32 0.0, %v1063
    %v1065 = vpop.f32.mrf.mxu0
    %v1066 = vpop.f32.mrf.mxu0
    %v1067 = vpop.f32.mrf.mxu0
    %1068 = vdwg.mxu0
    %v1069 = vadd.f32 %v817, %v1064
    %v1070 = vtanh.pop %v1069
    %v1071 = vpack.c.bf16 %v1070, %v1070
    %1072 = vmatprep.subr.bf16.mxu0 0
    %1073 = vmatpush1.bf16.msra.mxu0 %v891
    %1074 = vmatprep.subr.bf16.mxu0 0
    %1075 = vmatpush1.bf16.msra.mxu0 %v890
    %1076 = vmatprep.subr.bf16.mxu0 0
    %1077 = vmatpush1.bf16.msra.mxu0 %v889
    %1078 = vmatprep.subr.bf16.mxu0 0
    %1079 = vmatpush1.bf16.msra.mxu0 %v888
    %1080 = vmatprep.subr.bf16.mxu0 0
    %1081 = vmatpush1.bf16.msra.mxu0 %v887
    %1082 = vmatprep.subr.bf16.mxu0 0
    %1083 = vmatpush1.bf16.msra.mxu0 %v886
    %1084 = vmatprep.subr.bf16.mxu0 0
    %1085 = vmatpush1.bf16.msra.mxu0 %v885
    %1086 = vmatprep.subr.bf16.mxu0 0
    %1087 = vmatpush1.bf16.msra.mxu0 %v884
    %1088 = vmatprep.subr.bf16.mxu0 0
    %1089 = vmatpush2.bf16.msra.mxu0 0
    %1090 = vmatprep.subr.bf16.mxu0 0
    %1091 = vmatpush2.bf16.msra.mxu0 0
    %1092 = vmatprep.subr.bf16.mxu0 0
    %1093 = vmatpush2.bf16.msra.mxu0 0
    %1094 = vmatprep.subr.bf16.mxu0 0
    %1095 = vmatpush2.bf16.msra.mxu0 0
    %1096 = vmatprep.subr.bf16.mxu0 0
    %1097 = vmatpush2.bf16.msra.mxu0 0
    %1098 = vmatprep.subr.bf16.mxu0 0
    %1099 = vmatpush2.bf16.msra.mxu0 0
    %1100 = vmatprep.subr.bf16.mxu0 0
    %1101 = vmatpush2.bf16.msra.mxu0 0
    %1102 = vmatprep.subr.bf16.mxu0 0
    %1103 = vmatpush2.bf16.msra.mxu0 0
    %1104 = vmatprep.mubr.bf16.mxu0 0
    %1105 = vmatmul.mubr.bf16.gmra.mxu0 %v1071
    %v1106 = vpop.f32.mrf.mxu0
    %v1107 = vadd.f32 0.0, %v1106
    %v1108 = vpop.f32.mrf.mxu0
    %v1109 = vpop.f32.mrf.mxu0
    %v1110 = vpop.f32.mrf.mxu0
    %1111 = vdwg.mxu0
    %v1112 = vadd.f32 %v822, %v1107
    %v1113 = vtanh.pop %v1112
    %v1114 = vpack.c.bf16 %v1113, %v1113
    %1115 = vmatprep.subr.bf16.mxu0 0
    %1116 = vmatpush1.bf16.msra.mxu0 %v891
    %1117 = vmatprep.subr.bf16.mxu0 0
    %1118 = vmatpush1.bf16.msra.mxu0 %v890
    %1119 = vmatprep.subr.bf16.mxu0 0
    %1120 = vmatpush1.bf16.msra.mxu0 %v889
    %1121 = vmatprep.subr.bf16.mxu0 0
    %1122 = vmatpush1.bf16.msra.mxu0 %v888
    %1123 = vmatprep.subr.bf16.mxu0 0
    %1124 = vmatpush1.bf16.msra.mxu0 %v887
    %1125 = vmatprep.subr.bf16.mxu0 0
    %1126 = vmatpush1.bf16.msra.mxu0 %v886
    %1127 = vmatprep.subr.bf16.mxu0 0
    %1128 = vmatpush1.bf16.msra.mxu0 %v885
    %1129 = vmatprep.subr.bf16.mxu0 0
    %1130 = vmatpush1.bf16.msra.mxu0 %v884
    %1131 = vmatprep.subr.bf16.mxu0 0
    %1132 = vmatpush2.bf16.msra.mxu0 0
    %1133 = vmatprep.subr.bf16.mxu0 0
    %1134 = vmatpush2.bf16.msra.mxu0 0
    %1135 = vmatprep.subr.bf16.mxu0 0
    %1136 = vmatpush2.bf16.msra.mxu0 0
    %1137 = vmatprep.subr.bf16.mxu0 0
    %1138 = vmatpush2.bf16.msra.mxu0 0
    %1139 = vmatprep.subr.bf16.mxu0 0
    %1140 = vmatpush2.bf16.msra.mxu0 0
    %1141 = vmatprep.subr.bf16.mxu0 0
    %1142 = vmatpush2.bf16.msra.mxu0 0
    %1143 = vmatprep.subr.bf16.mxu0 0
    %1144 = vmatpush2.bf16.msra.mxu0 0
    %1145 = vmatprep.subr.bf16.mxu0 0
    %1146 = vmatpush2.bf16.msra.mxu0 0
    %1147 = vmatprep.mubr.bf16.mxu0 0
    %1148 = vmatmul.mubr.bf16.gmra.mxu0 %v1114
    %v1149 = vpop.f32.mrf.mxu0
    %v1150 = vadd.f32 0.0, %v1149
    %v1151 = vpop.f32.mrf.mxu0
    %v1152 = vpop.f32.mrf.mxu0
    %v1153 = vpop.f32.mrf.mxu0
    %1154 = vdwg.mxu0
    %v1155 = vadd.f32 %v825, %v1150
    %v1156 = vtanh.pop %v1155
    %v1157 = vpack.c.bf16 %v1156, %v1156
    %1158 = vmatprep.subr.bf16.mxu0 0
    %1159 = vmatpush1.bf16.msra.mxu0 %v891
    %1160 = vmatprep.subr.bf16.mxu0 0
    %1161 = vmatpush1.bf16.msra.mxu0 %v890
    %1162 = vmatprep.subr.bf16.mxu0 0
    %1163 = vmatpush1.bf16.msra.mxu0 %v889
    %1164 = vmatprep.subr.bf16.mxu0 0
    %1165 = vmatpush1.bf16.msra.mxu0 %v888
    %1166 = vmatprep.subr.bf16.mxu0 0
    %1167 = vmatpush1.bf16.msra.mxu0 %v887
    %1168 = vmatprep.subr.bf16.mxu0 0
    %1169 = vmatpush1.bf16.msra.mxu0 %v886
    %1170 = vmatprep.subr.bf16.mxu0 0
    %1171 = vmatpush1.bf16.msra.mxu0 %v885
    %1172 = vmatprep.subr.bf16.mxu0 0
    %1173 = vmatpush1.bf16.msra.mxu0 %v884
    %1174 = vmatprep.subr.bf16.mxu0 0
    %1175 = vmatpush2.bf16.msra.mxu0 0
    %1176 = vmatprep.subr.bf16.mxu0 0
    %1177 = vmatpush2.bf16.msra.mxu0 0
    %1178 = vmatprep.subr.bf16.mxu0 0
    %1179 = vmatpush2.bf16.msra.mxu0 0
    %1180 = vmatprep.subr.bf16.mxu0 0
    %1181 = vmatpush2.bf16.msra.mxu0 0
    %1182 = vmatprep.subr.bf16.mxu0 0
    %1183 = vmatpush2.bf16.msra.mxu0 0
    %1184 = vmatprep.subr.bf16.mxu0 0
    %1185 = vmatpush2.bf16.msra.mxu0 0
    %1186 = vmatprep.subr.bf16.mxu0 0
    %1187 = vmatpush2.bf16.msra.mxu0 0
    %1188 = vmatprep.subr.bf16.mxu0 0
    %1189 = vmatpush2.bf16.msra.mxu0 0
    %1190 = vmatprep.mubr.bf16.mxu0 0
    %1191 = vmatmul.mubr.bf16.gmra.mxu0 %v1157
    %v1192 = vpop.f32.mrf.mxu0
    %v1193 = vadd.f32 0.0, %v1192
    %v1194 = vpop.f32.mrf.mxu0
    %v1195 = vpop.f32.mrf.mxu0
    %v1196 = vpop.f32.mrf.mxu0
    %1197 = vdwg.mxu0
    %v1198 = vadd.f32 %v830, %v1193
    %v1199 = vtanh.pop %v1198
    %v1200 = vpack.c.bf16 %v1199, %v1199
    %1201 = vmatprep.subr.bf16.mxu0 0
    %1202 = vmatpush1.bf16.msra.mxu0 %v891
    %1203 = vmatprep.subr.bf16.mxu0 0
    %1204 = vmatpush1.bf16.msra.mxu0 %v890
    %1205 = vmatprep.subr.bf16.mxu0 0
    %1206 = vmatpush1.bf16.msra.mxu0 %v889
    %1207 = vmatprep.subr.bf16.mxu0 0
    %1208 = vmatpush1.bf16.msra.mxu0 %v888
    %1209 = vmatprep.subr.bf16.mxu0 0
    %1210 = vmatpush1.bf16.msra.mxu0 %v887
    %1211 = vmatprep.subr.bf16.mxu0 0
    %1212 = vmatpush1.bf16.msra.mxu0 %v886
    %1213 = vmatprep.subr.bf16.mxu0 0
    %1214 = vmatpush1.bf16.msra.mxu0 %v885
    %1215 = vmatprep.subr.bf16.mxu0 0
    %1216 = vmatpush1.bf16.msra.mxu0 %v884
    %1217 = vmatprep.subr.bf16.mxu0 0
    %1218 = vmatpush2.bf16.msra.mxu0 0
    %1219 = vmatprep.subr.bf16.mxu0 0
    %1220 = vmatpush2.bf16.msra.mxu0 0
    %1221 = vmatprep.subr.bf16.mxu0 0
    %1222 = vmatpush2.bf16.msra.mxu0 0
    %1223 = vmatprep.subr.bf16.mxu0 0
    %1224 = vmatpush2.bf16.msra.mxu0 0
    %1225 = vmatprep.subr.bf16.mxu0 0
    %1226 = vmatpush2.bf16.msra.mxu0 0
    %1227 = vmatprep.subr.bf16.mxu0 0
    %1228 = vmatpush2.bf16.msra.mxu0 0
    %1229 = vmatprep.subr.bf16.mxu0 0
    %1230 = vmatpush2.bf16.msra.mxu0 0
    %1231 = vmatprep.subr.bf16.mxu0 0
    %1232 = vmatpush2.bf16.msra.mxu0 0
    %1233 = vmatprep.mubr.bf16.mxu0 0
    %1234 = vmatmul.mubr.bf16.gmra.mxu0 %v1200
    %v1235 = vpop.f32.mrf.mxu0
    %v1236 = vadd.f32 0.0, %v1235
    %v1237 = vpop.f32.mrf.mxu0
    %v1238 = vpop.f32.mrf.mxu0
    %v1239 = vpop.f32.mrf.mxu0
    %1240 = vdwg.mxu0
    %v1241 = vadd.f32 %v833, %v1236
    %v1242 = vtanh.pop %v1241
    %s1243 = scalar_lea.vmem %s10, 8
    %1244 = vst [vmem:[%s1243] sm:$0xff] %v1242
    %v1245 = vpack.c.bf16 %v984, %v941
    %v1246 = vpack.c.bf16 %v1070, %v1027
    %v1247 = vpack.c.bf16 %v1156, %v1113
    %v1248 = vpack.c.bf16 %v1242, %v1199
    %v1249 = vld [vmem:[#allocation7] sm:$0xf]
    %v1250 = vld [vmem:[#allocation7 + $0x4] sm:$0xf]
    %v1251 = vld [vmem:[#allocation7 + $0x8] sm:$0xf]
    %v1252 = vld [vmem:[#allocation7 + $0xc] sm:$0xf]
    %v1253 = vld [vmem:[#allocation7 + $0x10] sm:$0xf]
    %v1254 = vld [vmem:[#allocation7 + $0x14] sm:$0xf]
    %v1255 = vld [vmem:[#allocation7 + $0x18] sm:$0xf]
    %v1256 = vld [vmem:[#allocation7 + $0x1c] sm:$0xf]
    %v1257 = vld [vmem:[#allocation7 + $0x20] sm:$0xf]
    %v1258 = vld [vmem:[#allocation7 + $0x24] sm:$0xf]
    %v1259 = vld [vmem:[#allocation7 + $0x28] sm:$0xf]
    %v1260 = vld [vmem:[#allocation7 + $0x2c] sm:$0xf]
    %v1261 = vld [vmem:[#allocation7 + $0x30] sm:$0xf]
    %v1262 = vld [vmem:[#allocation7 + $0x34] sm:$0xf]
    %v1263 = vld [vmem:[#allocation7 + $0x38] sm:$0xf]
    %v1264 = vld [vmem:[#allocation7 + $0x3c] sm:$0xf]
    %v1265 = vld [vmem:[%s8] sm:$0x1]
    %v1267 = vlaneseq
    %v1268 = vshrl.u32 %v1267, 7
    %v1269 = vsub.s32 0, %v1268
    %v1270 = vrot.slane %v1265, %v1269
    %v1288 = vunpack.c.l.b16 %v1249
    %v1289 = vunpack.c.l.b16 %v1250
    %v1290 = vunpack.c.l.b16 %v1251
    %v1291 = vunpack.c.l.b16 %v1252
    %v1292 = vunpack.c.l.b16 %v1253
    %v1293 = vunpack.c.l.b16 %v1254
    %v1294 = vunpack.c.l.b16 %v1255
    %v1295 = vunpack.c.l.b16 %v1256
    %v1296 = vunpack.c.l.b16 %v1257
    %v1297 = vunpack.c.l.b16 %v1258
    %v1298 = vunpack.c.l.b16 %v1259
    %v1299 = vunpack.c.l.b16 %v1260
    %v1300 = vunpack.c.l.b16 %v1261
    %v1301 = vunpack.c.l.b16 %v1262
    %v1302 = vunpack.c.l.b16 %v1263
    %v1303 = vunpack.c.l.b16 %v1264
    %v1304 = vpack.c.b16 %v1289, %v1288
    %v1305 = vpack.c.b16 %v1291, %v1290
    %v1306 = vpack.c.b16 %v1293, %v1292
    %v1307 = vpack.c.b16 %v1295, %v1294
    %v1308 = vpack.c.b16 %v1297, %v1296
    %v1309 = vpack.c.b16 %v1299, %v1298
    %v1310 = vpack.c.b16 %v1301, %v1300
    %v1311 = vpack.c.b16 %v1303, %v1302
    %1320 = vmatprep.subr.bf16.mxu0 0
    %1321 = vmatpush1.bf16.msra.mxu0 %v1311
    %1322 = vmatprep.subr.bf16.mxu0 0
    %1323 = vmatpush1.bf16.msra.mxu0 %v1310
    %1324 = vmatprep.subr.bf16.mxu0 0
    %1325 = vmatpush1.bf16.msra.mxu0 %v1309
    %1326 = vmatprep.subr.bf16.mxu0 0
    %1327 = vmatpush1.bf16.msra.mxu0 %v1308
    %1328 = vmatprep.subr.bf16.mxu0 0
    %1329 = vmatpush1.bf16.msra.mxu0 %v1307
    %1330 = vmatprep.subr.bf16.mxu0 0
    %1331 = vmatpush1.bf16.msra.mxu0 %v1306
    %1332 = vmatprep.subr.bf16.mxu0 0
    %1333 = vmatpush1.bf16.msra.mxu0 %v1305
    %1334 = vmatprep.subr.bf16.mxu0 0
    %1335 = vmatpush1.bf16.msra.mxu0 %v1304
    %1336 = vmatprep.subr.bf16.mxu0 0
    %1337 = vmatpush2.bf16.msra.mxu0 0
    %1338 = vmatprep.subr.bf16.mxu0 0
    %1339 = vmatpush2.bf16.msra.mxu0 0
    %1340 = vmatprep.subr.bf16.mxu0 0
    %1341 = vmatpush2.bf16.msra.mxu0 0
    %1342 = vmatprep.subr.bf16.mxu0 0
    %1343 = vmatpush2.bf16.msra.mxu0 0
    %1344 = vmatprep.subr.bf16.mxu0 0
    %1345 = vmatpush2.bf16.msra.mxu0 0
    %1346 = vmatprep.subr.bf16.mxu0 0
    %1347 = vmatpush2.bf16.msra.mxu0 0
    %1348 = vmatprep.subr.bf16.mxu0 0
    %1349 = vmatpush2.bf16.msra.mxu0 0
    %1350 = vmatprep.subr.bf16.mxu0 0
    %1351 = vmatpush2.bf16.msra.mxu0 0
    %1352 = vmatprep.mubr.bf16.mxu0 0
    %1353 = vmatmul.mubr.bf16.gmra.mxu0 %v1245
    %v1354 = vpop.f32.mrf.mxu0
    %v1355 = vadd.f32 %v1270, %v1354
    %v1356 = vpop.f32.mrf.mxu0
    %v1357 = vpop.f32.mrf.mxu0
    %v1358 = vadd.f32 %v1270, %v1357
    %v1359 = vpop.f32.mrf.mxu0
    %1360 = vmatprep.mubr.bf16.mxu0 0
    %1361 = vmatmul.mubr.bf16.gmra.mxu0 %v1246
    %v1362 = vpop.f32.mrf.mxu0
    %v1363 = vadd.f32 %v1270, %v1362
    %v1364 = vpop.f32.mrf.mxu0
    %v1365 = vpop.f32.mrf.mxu0
    %v1366 = vadd.f32 %v1270, %v1365
    %v1367 = vpop.f32.mrf.mxu0
    %1368 = vmatprep.mubr.bf16.mxu0 0
    %1369 = vmatmul.mubr.bf16.gmra.mxu0 %v1247
    %v1370 = vpop.f32.mrf.mxu0
    %v1371 = vadd.f32 %v1270, %v1370
    %v1372 = vpop.f32.mrf.mxu0
    %v1373 = vpop.f32.mrf.mxu0
    %v1374 = vadd.f32 %v1270, %v1373
    %v1375 = vpop.f32.mrf.mxu0
    %1376 = vmatprep.mubr.bf16.mxu0 0
    %1377 = vmatmul.mubr.bf16.gmra.mxu0 %v1248
    %v1378 = vpop.f32.mrf.mxu0
    %v1379 = vadd.f32 %v1270, %v1378
    %v1380 = vpop.f32.mrf.mxu0
    %v1381 = vpop.f32.mrf.mxu0
    %v1382 = vadd.f32 %v1270, %v1381
    %v1383 = vpop.f32.mrf.mxu0
    %1384 = vdwg.mxu0
    %1385 = vst [vmem:[%s9] sm:$0xff] %v1355
    %1386 = vst [vmem:[%s9 + $0x8] sm:$0xff] %v1358
    %1387 = vst [vmem:[%s9 + $0x10] sm:$0xff] %v1363
    %1388 = vst [vmem:[%s9 + $0x18] sm:$0xff] %v1366
    %1389 = vst [vmem:[%s9 + $0x20] sm:$0xff] %v1371
    %1390 = vst [vmem:[%s9 + $0x28] sm:$0xff] %v1374
    %1391 = vst [vmem:[%s9 + $0x30] sm:$0xff] %v1379
    %1392 = vst [vmem:[%s9 + $0x38] sm:$0xff] %v1382
    // Predicated region
    $region54: #{char_rnn_forward.1} parent=1 // pred_check
      _
    $region55: #{char_rnn_forward.1} parent=1 // pred_check_branch
      %1394 = sbr.rel (0) target = $region57
    $region56: #{char_rnn_forward.1} parent=1 // pred_region
      _
    $region57: #{char_rnn_forward.1} parent=1 // pred_fallthru
      _
    // Predicated region
    $region58: #{char_rnn_forward.1} parent=1 // pred_check
      _
    $region59: #{char_rnn_forward.1} parent=1 // pred_check_branch
      %1396 = sbr.rel (0) target = $region61
    $region60: #{char_rnn_forward.1} parent=1 // pred_region
      _
    $region61: #{char_rnn_forward.1} parent=1 // pred_fallthru
      _
    // Predicated region
    $region62: #{char_rnn_forward.1} parent=1 // pred_check
      _
    $region63: #{char_rnn_forward.1} parent=1 // pred_check_branch
      %1398 = sbr.rel (0) target = $region65
    $region64: #{char_rnn_forward.1} parent=1 // pred_region
      _
    $region65: #{char_rnn_forward.1} parent=1 // pred_fallthru
      _
    // Predicated region
    $region66: #{char_rnn_forward.1} parent=1 // pred_check
      _
    $region67: #{char_rnn_forward.1} parent=1 // pred_check_branch
      %1400 = sbr.rel (0) target = $region69
    $region68: #{char_rnn_forward.1} parent=1 // pred_region
      _
    $region69: #{char_rnn_forward.1} parent=1 // pred_fallthru
      _
    %1401 = vsyncpa [#allocation3], 1
    %1402 = vsyncpa [#allocation5], 1
    %1403 = vsyncpa [#allocation8], 1

</llo_original>
